<compile_context>
chip_gen: v5e
topology: v5e:2x2
jax: 0.10.0
libtpu: 0.0.40
codegen_flags: <defaults>
</compile_context>

<pallas_src>
import functools

import jax
import jax.numpy as jnp
import numpy as np
from jax import lax
from jax.experimental import pallas as pl
from jax.experimental.pallas import tpu as pltpu

LANES = 128


def _conv3x3_bias_relu_kernel(x_ref, w_ref, b_ref, o_ref, xpad_ref):
    # x_ref:    (1, H, W, Cin)        bf16  full image of the current batch
    # w_ref:    (9*Cin, Cout_pad)     bf16  conv weight, BN scale folded in
    # b_ref:    (1, Cout_pad)         f32   folded BN bias
    # o_ref:    (1, TH, W, Cout_pad)        current output row tile
    # xpad_ref: (TH+2, W+2, Cin)      bf16  VMEM scratch: zero-halo'd window
    W = x_ref.shape[2]
    cin = x_ref.shape[3]
    th = o_ref.shape[1]
    cout_p = o_ref.shape[3]

    r = pl.program_id(1)
    row0 = pl.multiple_of(r * th, th)

    # ---- build the zero-halo'd input window in VMEM (no HBM pad pass) ----
    xpad_ref[...] = jnp.zeros_like(xpad_ref)
    xpad_ref[1:th + 1, 1:W + 1, :] = x_ref[0, pl.ds(row0, th), :, :]

    @pl.when(r > 0)
    def _top_halo():
        xpad_ref[0:1, 1:W + 1, :] = x_ref[0, pl.ds(row0 - 1, 1), :, :]

    @pl.when(r < pl.num_programs(1) - 1)
    def _bottom_halo():
        xpad_ref[th + 1:th + 2, 1:W + 1, :] = x_ref[0, pl.ds(row0 + th, 1), :, :]

    # ---- im2col: (TH, W, 9*Cin) -> single matmul, K = 9*Cin, N lane-dense ----
    cols = [xpad_ref[ky:ky + th, kx:kx + W, :]
            for ky in range(3) for kx in range(3)]
    patches = jnp.concatenate(cols, axis=-1).reshape(th * W, 9 * cin)

    acc = jnp.dot(patches, w_ref[...], preferred_element_type=jnp.float32)

    # folded-BN bias + ReLU epilogue (f32), lane-dense store (Cout_pad = k*128)
    out = jnp.maximum(acc + b_ref[...], 0.0)
    o_ref[0] = out.reshape(th, W, cout_p).astype(o_ref.dtype)


def _round_up(n, m):
    return ((n + m - 1) // m) * m


def _pick_row_tile(h, target=8):
    if h <= target:
        return h
    for t in range(target, 0, -1):
        if h % t == 0:
            return t
    return h


def conv3x3_bn_relu_pallas(x_nhwc, w_hwio_eff, bias):
    """Fused 3x3 conv (stride 1, pad 1, no conv bias) + folded-BN + ReLU.

    x_nhwc:     (B, H, W, Cin)   any float dtype (cast to bf16 for the MXU)
    w_hwio_eff: (3, 3, Cin, Cout) f32, BN scale already folded in
    bias:       (Cout,)           f32, folded BN bias
    Returns (B, H, W, Cout_pad) bf16 with Cout_pad = round_up(Cout, 128);
    caller slices off the channel padding.
    """
    B, H, W, cin = x_nhwc.shape
    cout = w_hwio_eff.shape[-1]
    cout_p = _round_up(cout, LANES)
    th = _pick_row_tile(H)

    # weight -> (9*Cin, Cout_pad) bf16, bias -> (1, Cout_pad) f32
    w_p = jnp.pad(w_hwio_eff, ((0, 0), (0, 0), (0, 0), (0, cout_p - cout)))
    w2d = w_p.reshape(9 * cin, cout_p).astype(jnp.bfloat16)
    b2d = jnp.pad(bias, (0, cout_p - cout)).reshape(1, cout_p).astype(jnp.float32)

    return pl.pallas_call(
        _conv3x3_bias_relu_kernel,
        out_shape=jax.ShapeDtypeStruct((B, H, W, cout_p), jnp.bfloat16),
        grid_spec=pltpu.PrefetchScalarGridSpec(
            num_scalar_prefetch=0,
            grid=(B, H // th),
            in_specs=[
                # Per-batch image block; index is constant across row tiles so
                # the input DMA is not re-issued while r varies.
                pl.BlockSpec((1, H, W, cin), lambda b, r: (b, 0, 0, 0)),
                pl.BlockSpec((9 * cin, cout_p), lambda b, r: (0, 0)),
                pl.BlockSpec((1, cout_p), lambda b, r: (0, 0)),
            ],
            out_specs=pl.BlockSpec((1, th, W, cout_p), lambda b, r: (b, r, 0, 0)),
            scratch_shapes=[pltpu.VMEM((th + 2, W + 2, cin), jnp.bfloat16)],
        ),
        compiler_params=pltpu.CompilerParams(
            dimension_semantics=("parallel", "parallel"),
            vmem_limit_bytes=32 * 1024 * 1024,
        ),
    )(x_nhwc.astype(jnp.bfloat16), w2d, b2d)


def _fold_bn(w_oihw, gamma, beta, mean, var, eps):
    """Fold eval-mode BatchNorm into the conv weight / a bias vector."""
    inv = gamma / jnp.sqrt(var + eps)                     # (Cout,)
    w_hwio = jnp.transpose(w_oihw, (2, 3, 1, 0))          # (3, 3, Cin, Cout)
    return w_hwio * inv[None, None, None, :], beta - mean * inv


def unet_block_forward(x_nchw, params, upsample=False, eps=1e-5):
    """UnetBlock forward: relu(bn1(conv1(x))) [-> 2x bilinear] -> relu(bn2(conv2))."""
    (w1, g1, be1, m1, v1), (w2, g2, be2, m2, v2) = params
    B, ni, H, W = x_nchw.shape
    nf = w2.shape[0]

    w1e, bias1 = _fold_bn(w1, g1, be1, m1, v1, eps)
    w2e, bias2 = _fold_bn(w2, g2, be2, m2, v2, eps)

    # single NCHW -> NHWC transpose in, single transpose out; NHWC in between
    x_nhwc = jnp.transpose(x_nchw, (0, 2, 3, 1)).astype(jnp.bfloat16)

    h = conv3x3_bn_relu_pallas(x_nhwc, w1e, bias1)[..., :ni]   # (B,H,W,ni) bf16
    if upsample:
        # jax.image.resize 'bilinear' uses half-pixel centers, matching
        # F.interpolate(mode='bilinear', align_corners=False).
        h = jax.image.resize(h, (B, 2 * H, 2 * W, ni), method="bilinear")

    y = conv3x3_bn_relu_pallas(h, w2e, bias2)[..., :nf]        # (B,H',W',nf)
    return jnp.transpose(y, (0, 3, 1, 2)).astype(x_nchw.dtype)


# ---------------------------- XLA reference ----------------------------------
def _ref_conv_bn_relu(x_bf16_nhwc, w_hwio_eff, bias):
    out = lax.conv_general_dilated(
        x_bf16_nhwc, w_hwio_eff.astype(jnp.bfloat16),
        window_strides=(1, 1), padding=((1, 1), (1, 1)),
        dimension_numbers=("NHWC", "HWIO", "NHWC"),
        preferred_element_type=jnp.float32)
    out = jnp.maximum(out + bias[None, None, None, :].astype(jnp.float32), 0.0)
    return out.astype(jnp.bfloat16)


def reference_forward(x_nchw, params, upsample=False, eps=1e-5):
    # Same math as the module (eval-mode BN folded), with the same bf16
    # quantization points as the Pallas path so the comparison is tight.
    (w1, g1, be1, m1, v1), (w2, g2, be2, m2, v2) = params
    B, ni, H, W = x_nchw.shape
    w1e, bias1 = _fold_bn(w1, g1, be1, m1, v1, eps)
    w2e, bias2 = _fold_bn(w2, g2, be2, m2, v2, eps)

    x_nhwc = jnp.transpose(x_nchw, (0, 2, 3, 1)).astype(jnp.bfloat16)
    h = _ref_conv_bn_relu(x_nhwc, w1e, bias1)
    if upsample:
        h = jax.image.resize(h, (B, 2 * H, 2 * W, h.shape[-1]), method="bilinear")
    y = _ref_conv_bn_relu(h, w2e, bias2)
    return jnp.transpose(y, (0, 3, 1, 2)).astype(x_nchw.dtype)


if __name__ == "__main__":
    key = jax.random.PRNGKey(0)
    ks = jax.random.split(key, 11)

    B, ni, nf, H, W = 2, 16, 8, 16, 16

    x = jax.random.normal(ks[0], (B, ni, H, W), jnp.float32)

    # conv1 / bn1  (ni -> ni)
    w1 = 0.1 * jax.random.normal(ks[1], (ni, ni, 3, 3), jnp.float32)
    g1 = 1.0 + 0.1 * jax.random.normal(ks[2], (ni,), jnp.float32)
    be1 = 0.1 * jax.random.normal(ks[3], (ni,), jnp.float32)
    m1 = 0.1 * jax.random.normal(ks[4], (ni,), jnp.float32)
    v1 = 1.0 + 0.1 * jnp.abs(jax.random.normal(ks[5], (ni,), jnp.float32))

    # conv2 / bn2  (ni -> nf)
    w2 = 0.1 * jax.random.normal(ks[6], (nf, ni, 3, 3), jnp.float32)
    g2 = 1.0 + 0.1 * jax.random.normal(ks[7], (nf,), jnp.float32)
    be2 = 0.1 * jax.random.normal(ks[8], (nf,), jnp.float32)
    m2 = 0.1 * jax.random.normal(ks[9], (nf,), jnp.float32)
    v2 = 1.0 + 0.1 * jnp.abs(jax.random.normal(ks[10], (nf,), jnp.float32))

    params = ((w1, g1, be1, m1, v1), (w2, g2, be2, m2, v2))

    for upsample in (False, True):
        fwd = jax.jit(functools.partial(unet_block_forward, upsample=upsample))
        out = jax.block_until_ready(fwd(x, params))
        ref = reference_forward(x, params, upsample=upsample)

        scale = 2 if upsample else 1
        assert out.shape == (B, nf, H * scale, W * scale), out.shape
        np.testing.assert_allclose(np.asarray(out), np.asarray(ref),
                                   rtol=1e-2, atol=1e-2)

    print("KERNEL_OK")
</pallas_src>

<mosaic_0001>
module attributes {stable_mosaic.version = 11 : i64} {
  func.func @_conv3x3_bias_relu_kernel(%arg0: i32, %arg1: i32, %arg2: memref<1x16x16x16xbf16, #tpu.memory_space<vmem>>, %arg3: memref<144x128xbf16, #tpu.memory_space<vmem>>, %arg4: memref<1x128xf32, #tpu.memory_space<vmem>>, %arg5: memref<1x8x16x128xbf16, #tpu.memory_space<vmem>>, %arg6: memref<10x18x16xbf16, #tpu.memory_space<vmem>>) attributes {dimension_semantics = [#tpu.dimension_semantics<parallel>, #tpu.dimension_semantics<parallel>], iteration_bounds = array<i64: 2, 2>, scalar_prefetch = 0 : i64, scratch_operands = 1 : i64, tpu.core_type = #tpu.core_type<tc>, window_params = [{transform_indices = @transform_0, window_bounds = array<i64: 1, 16, 16, 16>}, {pipeline_mode = #tpu.pipeline_mode<synchronous>, transform_indices = @transform_1, window_bounds = array<i64: 144, 128>}, {pipeline_mode = #tpu.pipeline_mode<synchronous>, transform_indices = @transform_2, window_bounds = array<i64: 1, 128>}, {transform_indices = @transform_3, window_bounds = array<i64: 1, 8, 16, 128>}]} {
    %c8_i32 = arith.constant 8 : i32
    %0 = arith.muli %arg1, %c8_i32 : i32
    %1 = tpu.assume_multiple %0, 8 : i32
    %cst = arith.constant 0.000000e+00 : bf16
    %2 = vector.broadcast %cst : bf16 to vector<10x18x16xbf16>
    %c0 = arith.constant 0 : index
    %c0_0 = arith.constant 0 : index
    %c0_1 = arith.constant 0 : index
    %3 = vector.load %arg6[%c0, %c0_0, %c0_1] : memref<10x18x16xbf16, #tpu.memory_space<vmem>>, vector<10x18x16xbf16>
    tpu.vector_store %arg6[%c0, %c0_0, %c0_1], %2 {strides = array<i32>} : memref<10x18x16xbf16, #tpu.memory_space<vmem>>, vector<10x18x16xbf16>,
    %c0_2 = arith.constant 0 : index
    %4 = arith.index_cast %1 : i32 to index
    %c0_3 = arith.constant 0 : index
    %c0_4 = arith.constant 0 : index
    %5 = vector.load %arg2[%c0_2, %4, %c0_3, %c0_4] : memref<1x16x16x16xbf16, #tpu.memory_space<vmem>>, vector<1x8x16x16xbf16>
    %6 = vector.shape_cast %5 : vector<1x8x16x16xbf16> to vector<8x16x16xbf16>
    %c1 = arith.constant 1 : index
    %c1_5 = arith.constant 1 : index
    %c0_6 = arith.constant 0 : index
    %7 = vector.load %arg6[%c1, %c1_5, %c0_6] : memref<10x18x16xbf16, #tpu.memory_space<vmem>>, vector<8x16x16xbf16>
    tpu.vector_store %arg6[%c1, %c1_5, %c0_6], %6 {strides = array<i32>} : memref<10x18x16xbf16, #tpu.memory_space<vmem>>, vector<8x16x16xbf16>,
    %c0_i32 = arith.constant 0 : i32
    %8 = arith.cmpi sgt, %arg1, %c0_i32 : i32
    %9 = arith.extui %8 : i1 to i32
    %c0_i32_7 = arith.constant 0 : i32
    %10 = arith.cmpi ne, %9, %c0_i32_7 : i32
    scf.if %10 {
      %c1_i32_45 = arith.constant 1 : i32
      %37 = arith.subi %1, %c1_i32_45 : i32
      %c0_46 = arith.constant 0 : index
      %38 = arith.index_cast %37 : i32 to index
      %c0_47 = arith.constant 0 : index
      %c0_48 = arith.constant 0 : index
      %39 = vector.load %arg2[%c0_46, %38, %c0_47, %c0_48] : memref<1x16x16x16xbf16, #tpu.memory_space<vmem>>, vector<1x1x16x16xbf16>
      %40 = vector.shape_cast %39 : vector<1x1x16x16xbf16> to vector<1x16x16xbf16>
      %c0_49 = arith.constant 0 : index
      %c1_50 = arith.constant 1 : index
      %c0_51 = arith.constant 0 : index
      %41 = vector.load %arg6[%c0_49, %c1_50, %c0_51] : memref<10x18x16xbf16, #tpu.memory_space<vmem>>, vector<1x16x16xbf16>
      tpu.vector_store %arg6[%c0_49, %c1_50, %c0_51], %40 {strides = array<i32>} : memref<10x18x16xbf16, #tpu.memory_space<vmem>>, vector<1x16x16xbf16>,
    } else {
    }
    %c1_i32 = arith.constant 1 : i32
    %11 = arith.cmpi slt, %arg1, %c1_i32 : i32
    %12 = arith.extui %11 : i1 to i32
    %c0_i32_8 = arith.constant 0 : i32
    %13 = arith.cmpi ne, %12, %c0_i32_8 : i32
    scf.if %13 {
      %c8_i32_45 = arith.constant 8 : i32
      %37 = arith.addi %1, %c8_i32_45 : i32
      %c0_46 = arith.constant 0 : index
      %38 = arith.index_cast %37 : i32 to index
      %c0_47 = arith.constant 0 : index
      %c0_48 = arith.constant 0 : index
      %39 = vector.load %arg2[%c0_46, %38, %c0_47, %c0_48] : memref<1x16x16x16xbf16, #tpu.memory_space<vmem>>, vector<1x1x16x16xbf16>
      %40 = vector.shape_cast %39 : vector<1x1x16x16xbf16> to vector<1x16x16xbf16>
      %c9 = arith.constant 9 : index
      %c1_49 = arith.constant 1 : index
      %c0_50 = arith.constant 0 : index
      %41 = vector.load %arg6[%c9, %c1_49, %c0_50] : memref<10x18x16xbf16, #tpu.memory_space<vmem>>, vector<1x16x16xbf16>
      tpu.vector_store %arg6[%c9, %c1_49, %c0_50], %40 {strides = array<i32>} : memref<10x18x16xbf16, #tpu.memory_space<vmem>>, vector<1x16x16xbf16>,
    } else {
    }
    %c0_9 = arith.constant 0 : index
    %c0_10 = arith.constant 0 : index
    %c0_11 = arith.constant 0 : index
    %14 = vector.load %arg6[%c0_9, %c0_10, %c0_11] : memref<10x18x16xbf16, #tpu.memory_space<vmem>>, vector<8x16x16xbf16>
    %c0_12 = arith.constant 0 : index
    %c1_13 = arith.constant 1 : index
    %c0_14 = arith.constant 0 : index
    %15 = vector.load %arg6[%c0_12, %c1_13, %c0_14] : memref<10x18x16xbf16, #tpu.memory_space<vmem>>, vector<8x16x16xbf16>
    %c0_15 = arith.constant 0 : index
    %c2 = arith.constant 2 : index
    %c0_16 = arith.constant 0 : index
    %16 = vector.load %arg6[%c0_15, %c2, %c0_16] : memref<10x18x16xbf16, #tpu.memory_space<vmem>>, vector<8x16x16xbf16>
    %c1_17 = arith.constant 1 : index
    %c0_18 = arith.constant 0 : index
    %c0_19 = arith.constant 0 : index
    %17 = vector.load %arg6[%c1_17, %c0_18, %c0_19] : memref<10x18x16xbf16, #tpu.memory_space<vmem>>, vector<8x16x16xbf16>
    %c1_20 = arith.constant 1 : index
    %c1_21 = arith.constant 1 : index
    %c0_22 = arith.constant 0 : index
    %18 = vector.load %arg6[%c1_20, %c1_21, %c0_22] : memref<10x18x16xbf16, #tpu.memory_space<vmem>>, vector<8x16x16xbf16>
    %c1_23 = arith.constant 1 : index
    %c2_24 = arith.constant 2 : index
    %c0_25 = arith.constant 0 : index
    %19 = vector.load %arg6[%c1_23, %c2_24, %c0_25] : memref<10x18x16xbf16, #tpu.memory_space<vmem>>, vector<8x16x16xbf16>
    %c2_26 = arith.constant 2 : index
    %c0_27 = arith.constant 0 : index
    %c0_28 = arith.constant 0 : index
    %20 = vector.load %arg6[%c2_26, %c0_27, %c0_28] : memref<10x18x16xbf16, #tpu.memory_space<vmem>>, vector<8x16x16xbf16>
    %c2_29 = arith.constant 2 : index
    %c1_30 = arith.constant 1 : index
    %c0_31 = arith.constant 0 : index
    %21 = vector.load %arg6[%c2_29, %c1_30, %c0_31] : memref<10x18x16xbf16, #tpu.memory_space<vmem>>, vector<8x16x16xbf16>
    %c2_32 = arith.constant 2 : index
    %c2_33 = arith.constant 2 : index
    %c0_34 = arith.constant 0 : index
    %22 = vector.load %arg6[%c2_32, %c2_33, %c0_34] : memref<10x18x16xbf16, #tpu.memory_space<vmem>>, vector<8x16x16xbf16>
    %23 = tpu.concatenate %14, %15, %16, %17, %18, %19, %20, %21, %22 in 2 : vector<8x16x16xbf16>, vector<8x16x16xbf16>, vector<8x16x16xbf16>, vector<8x16x16xbf16>, vector<8x16x16xbf16>, vector<8x16x16xbf16>, vector<8x16x16xbf16>, vector<8x16x16xbf16>, vector<8x16x16xbf16> -> vector<8x16x144xbf16>
    %24 = vector.shape_cast %23 : vector<8x16x144xbf16> to vector<128x144xbf16>
    %c0_35 = arith.constant 0 : index
    %c0_36 = arith.constant 0 : index
    %25 = vector.load %arg3[%c0_35, %c0_36] : memref<144x128xbf16, #tpu.memory_space<vmem>>, vector<144x128xbf16>
    %cst_37 = arith.constant dense<0.000000e+00> : vector<128x128xf32>
    %26 = tpu.matmul %24, %25, %cst_37 {dimension_numbers = #tpu.dot_dimension_numbers<[1], [0], [0], [1], [0, 0, 1, 1], [], []>} : vector<128x144xbf16>, vector<144x128xbf16>, vector<128x128xf32> -> vector<128x128xf32>
    %c0_38 = arith.constant 0 : index
    %c0_39 = arith.constant 0 : index
    %27 = vector.load %arg4[%c0_38, %c0_39] : memref<1x128xf32, #tpu.memory_space<vmem>>, vector<1x128xf32>
    %28 = vector.broadcast %27 : vector<1x128xf32> to vector<128x128xf32>
    %29 = arith.addf %26, %28 : vector<128x128xf32>
    %cst_40 = arith.constant 0.000000e+00 : f32
    %30 = vector.broadcast %cst_40 : f32 to vector<128x128xf32>
    %31 = arith.maximumf %29, %30 : vector<128x128xf32>
    %32 = vector.shape_cast %31 : vector<128x128xf32> to vector<8x16x128xf32>
    %33 = arith.truncf %32 : vector<8x16x128xf32> to vector<8x16x128xbf16>
    %c0_41 = arith.constant 0 : index
    %c0_42 = arith.constant 0 : index
    %c0_43 = arith.constant 0 : index
    %c0_44 = arith.constant 0 : index
    %34 = vector.load %arg5[%c0_41, %c0_42, %c0_43, %c0_44] : memref<1x8x16x128xbf16, #tpu.memory_space<vmem>>, vector<1x8x16x128xbf16>
    %35 = vector.shape_cast %34 : vector<1x8x16x128xbf16> to vector<8x16x128xbf16>
    %36 = vector.shape_cast %33 : vector<8x16x128xbf16> to vector<1x8x16x128xbf16>
    tpu.vector_store %arg5[%c0_41, %c0_42, %c0_43, %c0_44], %36 {strides = array<i32>} : memref<1x8x16x128xbf16, #tpu.memory_space<vmem>>, vector<1x8x16x128xbf16>,
    return
  }
  func.func @transform_0(%arg0: i32, %arg1: i32) -> (i32, i32, i32, i32) {
    %c0_i32 = arith.constant 0 : i32
    %c0_i32_0 = arith.constant 0 : i32
    %c0_i32_1 = arith.constant 0 : i32
    %c0_i32_2 = arith.constant 0 : i32
    return %arg0, %c0_i32, %c0_i32_0, %c0_i32_1 : i32, i32, i32, i32
  }
  func.func @transform_1(%arg0: i32, %arg1: i32) -> (i32, i32) {
    %c0_i32 = arith.constant 0 : i32
    %c0_i32_0 = arith.constant 0 : i32
    %c0_i32_1 = arith.constant 0 : i32
    return %c0_i32, %c0_i32_0 : i32, i32
  }
  func.func @transform_2(%arg0: i32, %arg1: i32) -> (i32, i32) {
    %c0_i32 = arith.constant 0 : i32
    %c0_i32_0 = arith.constant 0 : i32
    %c0_i32_1 = arith.constant 0 : i32
    return %c0_i32, %c0_i32_0 : i32, i32
  }
  func.func @transform_3(%arg0: i32, %arg1: i32) -> (i32, i32, i32, i32) {
    %c0_i32 = arith.constant 0 : i32
    %c0_i32_0 = arith.constant 0 : i32
    %c0_i32_1 = arith.constant 0 : i32
    return %arg0, %arg1, %c0_i32, %c0_i32_0 : i32, i32, i32, i32
  }
}

</mosaic_0001>

<llo_original>
// kernel: unet_block_forward.2
$region0: #{unet_block_forward.2}
  #allocation0 [shape = 'u32[]', space=smem, size = 0x4, offset = 0x4, fixed_abs, tag = 'smem constant byte address 0x4 - core index']
  #allocation1 [shape = 'u32[72,128]{1,0:T(1,128)}', space=vmem, size = 0x9000, scoped, tag = 'internal scratch']
  #allocation2 [shape = 'bf16[10,18,16]{2,1,0:T(8,128)(2,1)}', space=vmem, size = 0xf000, scoped, tag = 'scratch operand']
  %s0 = inlined_call_operand.vmem [shape: bf16[2,16,16,16], index: 0, kind: input, shape index: {}]
  %s1 = inlined_call_operand.vmem [shape: bf16[144,128], index: 1, kind: input, shape index: {}]
  %s2 = inlined_call_operand.vmem [shape: f32[1,128], index: 2, kind: input, shape index: {}]
  %s3 = inlined_call_operand.vmem [shape: bf16[2,16,16,128], index: 3, kind: output, shape index: {}]
  %s4 = sld [smem:[#allocation0]]
  $region53: #{unet_block_forward.2} parent=0
    _
  %s6 = ssub.s32 1, %s4
  %s7 = scalar_select 0, %s6, %s4
  loop: start=0, step=1, limit=6
  $region2: #{unet_block_forward.2} parent=0 // loop_pre_header
    _
  $region3: #{unet_block_forward.2} parent=0 // loop_header
    %s9 = sphi 0, %s13
    %p10 = scmp.ge.s32.totalorder %s9, 6
    %s16 = sphi 0, %s28
    %s17 = sphi 0, %s24
    %s18 = sphi 0, %s16
    %s19 = sphi 0, %s17
    %s20 = sphi 0, %s18
    %s21 = sphi 0, %s19
    %s31 = sphi 0, %s33
    %s34 = sphi 0, %s31
    %s35 = sphi 0, %s34
    %s51 = sphi 0, %s35
    %s55 = sphi 0, %s55
    %s57 = sphi 0, %s55
    %s58 = sphi 0, %s57
    %s72 = sphi 0, %s58
    %s76 = sphi 0, %s76
    %s78 = sphi 0, %s76
    %s79 = sphi 0, %s78
    %s93 = sphi 0, %s79
    %s101 = sphi 0, %s103
    %s104 = sphi 0, %s101
    %s105 = sphi 0, %s104
    %s121 = sphi 0, %s105
  $region4: #{unet_block_forward.2} parent=0 // loop_header_branch
    %12 = sbr.rel (%p10) target = $region8
  $region5: #{unet_block_forward.2} parent=0 // loop_body
    %s14 = ssub.s32 %s9, 1
    %s15 = ssub.s32 %s9, 2
    %s22 = sadd.s32 1, %s17
    %p23 = scmp.ge.s32.totalorder %s22, 2
    %s24 = scalar_select %p23, 0, %s22
    %s25 = sadd.s32 1, %s16
    %s26 = scalar_select %p23, %s25, %s16
    %p27 = scmp.ge.s32.totalorder %s26, 2
    %s28 = scalar_select %p27, 0, %s26
    %s29 = ssub.s32 %s16, %s28
    %p30 = scmp.eq.s32.totalorder %s29, 0
    %s32 = sadd.s32 %s31, 1
    %s33 = scalar_select %p30, %s31, %s32
    %p36 = pneg %p30
    %p37 = scmp.eq.s32.totalorder %s9, 3
    %p38 = por %p36, %p37
    %p39 = scmp.ne.s32.totalorder %s31, %s34
    %p40 = scmp.eq.s32.totalorder %s9, 0
    %p41 = por %p39, %p40
    %p42 = scmp.ne.s32.totalorder %s31, %s34
    %p43 = scmp.eq.s32.totalorder %s14, 3
    %p44 = por %p42, %p43
    %p45 = scmp.ne.s32.totalorder %s34, %s35
    %p46 = scmp.eq.s32.totalorder %s14, 0
    %p47 = por %p45, %p46
    %p48 = scmp.ne.s32.totalorder %s34, %s35
    %p49 = scmp.eq.s32.totalorder %s15, 3
    %p50 = por %p48, %p49
    %p52 = scmp.ne.s32.totalorder %s35, %s51
    %p53 = scmp.eq.s32.totalorder %s15, 0
    %p54 = por %p52, %p53
    %s56 = sadd.s32 %s55, 1
    %p59 = scmp.eq.s32.totalorder %s9, 3
    %p60 = scmp.ne.s32.totalorder %s55, %s57
    %p61 = scmp.eq.s32.totalorder %s9, 0
    %p62 = por %p60, %p61
    %p63 = scmp.ne.s32.totalorder %s55, %s57
    %p64 = scmp.eq.s32.totalorder %s14, 3
    %p65 = por %p63, %p64
    %p66 = scmp.ne.s32.totalorder %s57, %s58
    %p67 = scmp.eq.s32.totalorder %s14, 0
    %p68 = por %p66, %p67
    %p69 = scmp.ne.s32.totalorder %s57, %s58
    %p70 = scmp.eq.s32.totalorder %s15, 3
    %p71 = por %p69, %p70
    %p73 = scmp.ne.s32.totalorder %s58, %s72
    %p74 = scmp.eq.s32.totalorder %s15, 0
    %p75 = por %p73, %p74
    %s77 = sadd.s32 %s76, 1
    %p80 = scmp.eq.s32.totalorder %s9, 3
    %p81 = scmp.ne.s32.totalorder %s76, %s78
    %p82 = scmp.eq.s32.totalorder %s9, 0
    %p83 = por %p81, %p82
    %p84 = scmp.ne.s32.totalorder %s76, %s78
    %p85 = scmp.eq.s32.totalorder %s14, 3
    %p86 = por %p84, %p85
    %p87 = scmp.ne.s32.totalorder %s78, %s79
    %p88 = scmp.eq.s32.totalorder %s14, 0
    %p89 = por %p87, %p88
    %p90 = scmp.ne.s32.totalorder %s78, %s79
    %p91 = scmp.eq.s32.totalorder %s15, 3
    %p92 = por %p90, %p91
    %p94 = scmp.ne.s32.totalorder %s79, %s93
    %p95 = scmp.eq.s32.totalorder %s15, 0
    %p96 = por %p94, %p95
    %s97 = ssub.s32 %s16, %s28
    %s98 = ssub.s32 %s17, %s24
    %s99 = sor.u32 %s97, %s98
    %p100 = scmp.eq.s32.totalorder %s99, 0
    %s102 = sadd.s32 %s101, 1
    %s103 = scalar_select %p100, %s101, %s102
    %p106 = pneg %p100
    %p107 = scmp.eq.s32.totalorder %s9, 3
    %p108 = por %p106, %p107
    %p109 = scmp.ne.s32.totalorder %s101, %s104
    %p110 = scmp.eq.s32.totalorder %s9, 0
    %p111 = por %p109, %p110
    %p112 = scmp.ne.s32.totalorder %s101, %s104
    %p113 = scmp.eq.s32.totalorder %s14, 3
    %p114 = por %p112, %p113
    %p115 = scmp.ne.s32.totalorder %s104, %s105
    %p116 = scmp.eq.s32.totalorder %s14, 0
    %p117 = por %p115, %p116
    %p118 = scmp.ne.s32.totalorder %s104, %s105
    %p119 = scmp.eq.s32.totalorder %s15, 3
    %p120 = por %p118, %p119
    %p122 = scmp.ne.s32.totalorder %s105, %s121
    %p123 = scmp.eq.s32.totalorder %s15, 0
    %p124 = por %p122, %p123
    %p125 = scmp.le.s32.totalorder 1, %s9
    %p126 = scmp.lt.s32.totalorder %s9, 5
    %p127 = pnand %p125, %p126
    %p128 = pneg %p127
    // Predicated region
    $region9: #{unet_block_forward.2} parent=5 // pred_check
      _
    $region10: #{unet_block_forward.2} parent=5 // pred_check_branch
      %130 = sbr.rel (%p127) target = $region12
    $region11: #{unet_block_forward.2} parent=5 // pred_region
      %s131 = ssub.s32 %s9, 1
      // Predicated region
      $region13: #{unet_block_forward.2} parent=11 // pred_check
        %p132 = pneg %p68
      $region14: #{unet_block_forward.2} parent=11 // pred_check_branch
        %134 = sbr.rel (%p132) target = $region16
      $region15: #{unet_block_forward.2} parent=11 // pred_region
        _
      $region16: #{unet_block_forward.2} parent=11 // pred_fallthru
        _
      // Predicated region
      $region17: #{unet_block_forward.2} parent=11 // pred_check
        %p135 = pneg %p89
      $region18: #{unet_block_forward.2} parent=11 // pred_check_branch
        %137 = sbr.rel (%p135) target = $region20
      $region19: #{unet_block_forward.2} parent=11 // pred_region
        _
      $region20: #{unet_block_forward.2} parent=11 // pred_fallthru
        _
    $region12: #{unet_block_forward.2} parent=5 // pred_fallthru
      _
    %p138 = scmp.lt.s32.totalorder %s9, 4
    // Predicated region
    $region21: #{unet_block_forward.2} parent=5 // pred_check
      %p139 = pneg %p138
    $region22: #{unet_block_forward.2} parent=5 // pred_check_branch
      %141 = sbr.rel (%p139) target = $region24
    $region23: #{unet_block_forward.2} parent=5 // pred_region
      // Predicated region
      $region25: #{unet_block_forward.2} parent=23 // pred_check
        %p142 = pneg %p41
      $region26: #{unet_block_forward.2} parent=23 // pred_check_branch
        %144 = sbr.rel (%p142) target = $region28
      $region27: #{unet_block_forward.2} parent=23 // pred_region
        %p145 = scmp.lt.s32.totalorder %s16, 1
        %s146 = scalar_select %p145, %s16, 1
        %s147 = smul.addr %s146, 32
        %s148 = smul.addr %s147, 4
        %s149 = scalar_lea.vmem %s0, %s148
      $region28: #{unet_block_forward.2} parent=23 // pred_fallthru
        _
    $region24: #{unet_block_forward.2} parent=5 // pred_fallthru
      _
    %p150 = scmp.le.s32.totalorder 1, %s9
    %p151 = scmp.lt.s32.totalorder %s9, 5
    %p152 = pnand %p150, %p151
    %p153 = pneg %p152
    // Predicated region
    $region29: #{unet_block_forward.2} parent=5 // pred_check
      _
    $region30: #{unet_block_forward.2} parent=5 // pred_check_branch
      %155 = sbr.rel (%p152) target = $region32
    $region31: #{unet_block_forward.2} parent=5 // pred_region
      %s156 = ssub.s32 %s9, 1
      %p157 = scmp.lt.s32.totalorder %s18, 1
      %s158 = scalar_select %p157, %s18, 1
      %s159 = smul.addr %s158, 32
      %s160 = smul.addr %s159, 4
      %s161 = scalar_lea.vmem %s0, %s160
      %p162 = pneg %p47
      %p163 = pneg %p44
      %p164 = pneg %p68
      %p165 = pneg %p65
      %p166 = pneg %p89
      %p167 = pneg %p86
      %p168 = pneg %p117
      %p169 = pneg %p114
      %s170 = smul.u32 8, %s19
      %p171 = scmp.lt.s32.totalorder %s18, 1
      %s172 = scalar_select %p171, %s18, 1
      %p173 = scmp.lt.s32.totalorder %s170, 15
      %s174 = scalar_select %p173, %s170, 15
      %s175 = smul.addr %s174, 2
      %s176 = smul.addr %s172, 32
      %s177 = sadd.s32 %s175, %s176
      %s178 = smul.addr %s177, 4
      %s179 = scalar_lea.vmem %s3, %s178
      %p180 = scmp.lt.s32.totalorder %s18, 1
      %s181 = scalar_select %p180, %s18, 1
      %s182 = smul.addr %s181, 32
      %s183 = smul.addr %s182, 4
      %s184 = scalar_lea.vmem %s0, %s183
      %s185 = smul.u32 8, %s19
      %p186 = scmp.lt.s32.totalorder %s18, 1
      %s187 = scalar_select %p186, %s18, 1
      %p188 = scmp.lt.s32.totalorder %s185, 15
      %s189 = scalar_select %p188, %s185, 15
      %s190 = smul.addr %s189, 2
      %s191 = smul.addr %s187, 32
      %s192 = sadd.s32 %s190, %s191
      %s193 = smul.addr %s192, 4
      %s194 = scalar_lea.vmem %s3, %s193
      %s195 = smul.u32 8, %s19
      %s197 = smul.u32 %s19, 8
      %vm198 = vcmask 125952
      %199 = vst.msk [vmem:[#allocation2] sm:$0xf] %vm198, 0
      %200 = vst.msk [vmem:[#allocation2 + $0x4] sm:$0xf] %vm198, 0
      %vm201 = vcmask 122880
      %202 = vst.msk [vmem:[#allocation2 + $0x8] sm:$0x1] %vm201, 0
      %203 = vst.msk [vmem:[#allocation2 + $0xc] sm:$0xf] %vm198, 0
      %204 = vst.msk [vmem:[#allocation2 + $0x10] sm:$0xf] %vm198, 0
      %205 = vst.msk [vmem:[#allocation2 + $0x14] sm:$0x1] %vm201, 0
      %206 = vst.msk [vmem:[#allocation2 + $0x18] sm:$0xf] %vm198, 0
      %207 = vst.msk [vmem:[#allocation2 + $0x1c] sm:$0xf] %vm198, 0
      %208 = vst.msk [vmem:[#allocation2 + $0x20] sm:$0x1] %vm201, 0
      %209 = vst.msk [vmem:[#allocation2 + $0x24] sm:$0xf] %vm198, 0
      %210 = vst.msk [vmem:[#allocation2 + $0x28] sm:$0xf] %vm198, 0
      %211 = vst.msk [vmem:[#allocation2 + $0x2c] sm:$0x1] %vm201, 0
      %212 = vst.msk [vmem:[#allocation2 + $0x30] sm:$0xf] %vm198, 0
      %213 = vst.msk [vmem:[#allocation2 + $0x34] sm:$0xf] %vm198, 0
      %214 = vst.msk [vmem:[#allocation2 + $0x38] sm:$0x1] %vm201, 0
      %215 = vst.msk [vmem:[#allocation2 + $0x3c] sm:$0xf] %vm198, 0
      %216 = vst.msk [vmem:[#allocation2 + $0x40] sm:$0xf] %vm198, 0
      %217 = vst.msk [vmem:[#allocation2 + $0x44] sm:$0x1] %vm201, 0
      %218 = vst.msk [vmem:[#allocation2 + $0x48] sm:$0xf] %vm198, 0
      %219 = vst.msk [vmem:[#allocation2 + $0x4c] sm:$0xf] %vm198, 0
      %220 = vst.msk [vmem:[#allocation2 + $0x50] sm:$0x1] %vm201, 0
      %221 = vst.msk [vmem:[#allocation2 + $0x54] sm:$0xf] %vm198, 0
      %222 = vst.msk [vmem:[#allocation2 + $0x58] sm:$0xf] %vm198, 0
      %223 = vst.msk [vmem:[#allocation2 + $0x5c] sm:$0x1] %vm201, 0
      %224 = vst.msk [vmem:[#allocation2 + $0x60] sm:$0xf] %vm198, 0
      %225 = vst.msk [vmem:[#allocation2 + $0x64] sm:$0xf] %vm198, 0
      %226 = vst.msk [vmem:[#allocation2 + $0x68] sm:$0x1] %vm201, 0
      %227 = vst.msk [vmem:[#allocation2 + $0x6c] sm:$0xf] %vm198, 0
      %228 = vst.msk [vmem:[#allocation2 + $0x70] sm:$0xf] %vm198, 0
      %229 = vst.msk [vmem:[#allocation2 + $0x74] sm:$0x1] %vm201, 0
      %s230 = smul.u32 %s197, 2
      %s231 = smul.addr %s230, 4
      %s232 = scalar_lea.vmem %s184, %s231
      %v233 = vld [vmem:[%s232] sm:$0xf]
      %v234 = vld [vmem:[%s232 + $0x4] sm:$0xf]
      %v235 = vld [vmem:[%s232 + $0x8] sm:$0xf]
      %v236 = vld [vmem:[%s232 + $0xc] sm:$0xf]
      %v237 = vld [vmem:[%s232 + $0x10] sm:$0xf]
      %v238 = vld [vmem:[%s232 + $0x14] sm:$0xf]
      %v239 = vld [vmem:[%s232 + $0x18] sm:$0xf]
      %v240 = vld [vmem:[%s232 + $0x1c] sm:$0xf]
      %v241 = vld [vmem:[%s232 + $0x20] sm:$0xf]
      %v242 = vld [vmem:[%s232 + $0x24] sm:$0xf]
      %v243 = vld [vmem:[%s232 + $0x28] sm:$0xf]
      %v244 = vld [vmem:[%s232 + $0x2c] sm:$0xf]
      %v245 = vld [vmem:[%s232 + $0x30] sm:$0xf]
      %v246 = vld [vmem:[%s232 + $0x34] sm:$0xf]
      %v247 = vld [vmem:[%s232 + $0x38] sm:$0xf]
      %v248 = vld [vmem:[%s232 + $0x3c] sm:$0xf]
      %vm249 = vsmask.f32 256
      %vm250 = vsmask.f32 4368
      %vm251 = vmor %vm249, %vm250
      %v253 = vshrl.u32 %v233, 16
      %v255 = vrot.slane %v253, 7
      %v256 = vshll.u32 %v233, 16
      %v258 = vor.u32 %v255, %v256
      %v259 = vrot.slane %v255, 4
      %v261 = vshrl.u32 %v234, 16
      %v263 = vrot.slane %v261, 7
      %v264 = vshll.u32 %v234, 16
      %v266 = vor.u32 %v263, %v264
      %v267 = vsel %vm251, %v259, %v266
      %v268 = vrot.slane %v263, 4
      %v270 = vshrl.u32 %v235, 16
      %v272 = vrot.slane %v270, 7
      %v273 = vshll.u32 %v235, 16
      %v275 = vor.u32 %v272, %v273
      %v276 = vrot.slane %v272, 4
      %v278 = vshrl.u32 %v236, 16
      %v280 = vrot.slane %v278, 7
      %v281 = vshll.u32 %v236, 16
      %v283 = vor.u32 %v280, %v281
      %v284 = vsel %vm251, %v276, %v283
      %v285 = vrot.slane %v280, 4
      %v287 = vshrl.u32 %v237, 16
      %v289 = vrot.slane %v287, 7
      %v290 = vshll.u32 %v237, 16
      %v292 = vor.u32 %v289, %v290
      %v293 = vrot.slane %v289, 4
      %v295 = vshrl.u32 %v238, 16
      %v297 = vrot.slane %v295, 7
      %v298 = vshll.u32 %v238, 16
      %v300 = vor.u32 %v297, %v298
      %v301 = vsel %vm251, %v293, %v300
      %v302 = vrot.slane %v297, 4
      %v304 = vshrl.u32 %v239, 16
      %v306 = vrot.slane %v304, 7
      %v307 = vshll.u32 %v239, 16
      %v309 = vor.u32 %v306, %v307
      %v310 = vrot.slane %v306, 4
      %v312 = vshrl.u32 %v240, 16
      %v314 = vrot.slane %v312, 7
      %v315 = vshll.u32 %v240, 16
      %v317 = vor.u32 %v314, %v315
      %v318 = vsel %vm251, %v310, %v317
      %v319 = vrot.slane %v314, 4
      %v321 = vshrl.u32 %v241, 16
      %v323 = vrot.slane %v321, 7
      %v324 = vshll.u32 %v241, 16
      %v326 = vor.u32 %v323, %v324
      %v327 = vrot.slane %v323, 4
      %v329 = vshrl.u32 %v242, 16
      %v331 = vrot.slane %v329, 7
      %v332 = vshll.u32 %v242, 16
      %v334 = vor.u32 %v331, %v332
      %v335 = vsel %vm251, %v327, %v334
      %v336 = vrot.slane %v331, 4
      %v338 = vshrl.u32 %v243, 16
      %v340 = vrot.slane %v338, 7
      %v341 = vshll.u32 %v243, 16
      %v343 = vor.u32 %v340, %v341
      %v344 = vrot.slane %v340, 4
      %v346 = vshrl.u32 %v244, 16
      %v348 = vrot.slane %v346, 7
      %v349 = vshll.u32 %v244, 16
      %v351 = vor.u32 %v348, %v349
      %v352 = vsel %vm251, %v344, %v351
      %v353 = vrot.slane %v348, 4
      %v355 = vshrl.u32 %v245, 16
      %v357 = vrot.slane %v355, 7
      %v358 = vshll.u32 %v245, 16
      %v360 = vor.u32 %v357, %v358
      %v361 = vrot.slane %v357, 4
      %v363 = vshrl.u32 %v246, 16
      %v365 = vrot.slane %v363, 7
      %v366 = vshll.u32 %v246, 16
      %v368 = vor.u32 %v365, %v366
      %v369 = vsel %vm251, %v361, %v368
      %v370 = vrot.slane %v365, 4
      %v372 = vshrl.u32 %v247, 16
      %v374 = vrot.slane %v372, 7
      %v375 = vshll.u32 %v247, 16
      %v377 = vor.u32 %v374, %v375
      %v378 = vrot.slane %v374, 4
      %v380 = vshrl.u32 %v248, 16
      %v382 = vrot.slane %v380, 7
      %v383 = vshll.u32 %v248, 16
      %v385 = vor.u32 %v382, %v383
      %v386 = vsel %vm251, %v378, %v385
      %v387 = vrot.slane %v382, 4
      %s412 = scalar_lea.vmem [#allocation2], 12
      %vm413 = vcmask 125952
      %vm414 = vsmask.f32 7938
      %vm415 = vmand %vm413, %vm414
      %v416 = vld [vmem:[%s412] sm:$0xf]
      %v417 = vsel %vm415, %v258, %v416
      %418 = vst [vmem:[%s412] sm:$0xf] %v417
      %419 = vst.msk [vmem:[%s412 + $0x4] sm:$0xf] %vm198, %v267
      %vm420 = vcmask 122880
      %vm421 = vmand %vm420, %vm249
      %v422 = vld [vmem:[%s412 + $0x8] sm:$0x1]
      %v423 = vsel %vm421, %v268, %v422
      %424 = vst [vmem:[%s412 + $0x8] sm:$0x1] %v423
      %v425 = vld [vmem:[%s412 + $0xc] sm:$0xf]
      %v426 = vsel %vm415, %v275, %v425
      %427 = vst [vmem:[%s412 + $0xc] sm:$0xf] %v426
      %428 = vst.msk [vmem:[%s412 + $0x10] sm:$0xf] %vm198, %v284
      %v429 = vld [vmem:[%s412 + $0x14] sm:$0x1]
      %v430 = vsel %vm421, %v285, %v429
      %431 = vst [vmem:[%s412 + $0x14] sm:$0x1] %v430
      %v432 = vld [vmem:[%s412 + $0x18] sm:$0xf]
      %v433 = vsel %vm415, %v292, %v432
      %434 = vst [vmem:[%s412 + $0x18] sm:$0xf] %v433
      %435 = vst.msk [vmem:[%s412 + $0x1c] sm:$0xf] %vm198, %v301
      %v436 = vld [vmem:[%s412 + $0x20] sm:$0x1]
      %v437 = vsel %vm421, %v302, %v436
      %438 = vst [vmem:[%s412 + $0x20] sm:$0x1] %v437
      %v439 = vld [vmem:[%s412 + $0x24] sm:$0xf]
      %v440 = vsel %vm415, %v309, %v439
      %441 = vst [vmem:[%s412 + $0x24] sm:$0xf] %v440
      %442 = vst.msk [vmem:[%s412 + $0x28] sm:$0xf] %vm198, %v318
      %v443 = vld [vmem:[%s412 + $0x2c] sm:$0x1]
      %v444 = vsel %vm421, %v319, %v443
      %445 = vst [vmem:[%s412 + $0x2c] sm:$0x1] %v444
      %v446 = vld [vmem:[%s412 + $0x30] sm:$0xf]
      %v447 = vsel %vm415, %v326, %v446
      %448 = vst [vmem:[%s412 + $0x30] sm:$0xf] %v447
      %449 = vst.msk [vmem:[%s412 + $0x34] sm:$0xf] %vm198, %v335
      %v450 = vld [vmem:[%s412 + $0x38] sm:$0x1]
      %v451 = vsel %vm421, %v336, %v450
      %452 = vst [vmem:[%s412 + $0x38] sm:$0x1] %v451
      %v453 = vld [vmem:[%s412 + $0x3c] sm:$0xf]
      %v454 = vsel %vm415, %v343, %v453
      %455 = vst [vmem:[%s412 + $0x3c] sm:$0xf] %v454
      %456 = vst.msk [vmem:[%s412 + $0x40] sm:$0xf] %vm198, %v352
      %v457 = vld [vmem:[%s412 + $0x44] sm:$0x1]
      %v458 = vsel %vm421, %v353, %v457
      %459 = vst [vmem:[%s412 + $0x44] sm:$0x1] %v458
      %v460 = vld [vmem:[%s412 + $0x48] sm:$0xf]
      %v461 = vsel %vm415, %v360, %v460
      %462 = vst [vmem:[%s412 + $0x48] sm:$0xf] %v461
      %463 = vst.msk [vmem:[%s412 + $0x4c] sm:$0xf] %vm198, %v369
      %v464 = vld [vmem:[%s412 + $0x50] sm:$0x1]
      %v465 = vsel %vm421, %v370, %v464
      %466 = vst [vmem:[%s412 + $0x50] sm:$0x1] %v465
      %v467 = vld [vmem:[%s412 + $0x54] sm:$0xf]
      %v468 = vsel %vm415, %v377, %v467
      %469 = vst [vmem:[%s412 + $0x54] sm:$0xf] %v468
      %470 = vst.msk [vmem:[%s412 + $0x58] sm:$0xf] %vm198, %v386
      %v471 = vld [vmem:[%s412 + $0x5c] sm:$0x1]
      %v472 = vsel %vm421, %v387, %v471
      %473 = vst [vmem:[%s412 + $0x5c] sm:$0x1] %v472
      %p474 = scmp.gt.s32.totalorder %s19, 0
      // Predicated region
      $region33: #{unet_block_forward.2} parent=31 // pred_check
        %p475 = pneg %p474
      $region34: #{unet_block_forward.2} parent=31 // pred_check_branch
        %477 = sbr.rel (%p475) target = $region36
      $region35: #{unet_block_forward.2} parent=31 // pred_region
        %s478 = ssub.s32 %s197, 1
        %s479 = smul.u32 %s478, 2
        %s480 = smul.addr %s479, 4
        %s481 = scalar_lea.vmem %s184, %s480
        %v482 = vld [vmem:[%s481] sm:$0xf]
        %v483 = vld [vmem:[%s481 + $0x4] sm:$0xf]
        %v485 = vshrl.u32 %v482, 16
        %v487 = vrot.slane %v485, 7
        %v488 = vshll.u32 %v482, 16
        %v490 = vor.u32 %v487, %v488
        %v491 = vrot.slane %v487, 4
        %v493 = vshrl.u32 %v483, 16
        %v495 = vrot.slane %v493, 7
        %v496 = vshll.u32 %v483, 16
        %v498 = vor.u32 %v495, %v496
        %v499 = vsel %vm251, %v491, %v498
        %v500 = vrot.slane %v495, 4
        %v504 = vld [vmem:[#allocation2] sm:$0xf]
        %v505 = vsel %vm415, %v490, %v504
        %506 = vst [vmem:[#allocation2] sm:$0xf] %v505
        %507 = vst.msk [vmem:[#allocation2 + $0x4] sm:$0xf] %vm198, %v499
        %v508 = vld [vmem:[#allocation2 + $0x8] sm:$0x1]
        %v509 = vsel %vm421, %v500, %v508
        %510 = vst [vmem:[#allocation2 + $0x8] sm:$0x1] %v509
      $region36: #{unet_block_forward.2} parent=31 // pred_fallthru
        _
      %p511 = scmp.lt.s32.totalorder %s19, 1
      // Predicated region
      $region37: #{unet_block_forward.2} parent=31 // pred_check
        %p512 = pneg %p511
      $region38: #{unet_block_forward.2} parent=31 // pred_check_branch
        %514 = sbr.rel (%p512) target = $region40
      $region39: #{unet_block_forward.2} parent=31 // pred_region
        %s515 = sadd.s32 %s197, 8
        %s516 = smul.u32 %s515, 2
        %s517 = smul.addr %s516, 4
        %s518 = scalar_lea.vmem %s184, %s517
        %v519 = vld [vmem:[%s518] sm:$0xf]
        %v520 = vld [vmem:[%s518 + $0x4] sm:$0xf]
        %v522 = vshrl.u32 %v519, 16
        %v524 = vrot.slane %v522, 7
        %v525 = vshll.u32 %v519, 16
        %v527 = vor.u32 %v524, %v525
        %v528 = vrot.slane %v524, 4
        %v530 = vshrl.u32 %v520, 16
        %v532 = vrot.slane %v530, 7
        %v533 = vshll.u32 %v520, 16
        %v535 = vor.u32 %v532, %v533
        %v536 = vsel %vm251, %v528, %v535
        %v537 = vrot.slane %v532, 4
        %s541 = scalar_lea.vmem [#allocation2], 108
        %v542 = vld [vmem:[%s541] sm:$0xf]
        %v543 = vsel %vm415, %v527, %v542
        %544 = vst [vmem:[%s541] sm:$0xf] %v543
        %545 = vst.msk [vmem:[%s541 + $0x4] sm:$0xf] %vm198, %v536
        %v546 = vld [vmem:[%s541 + $0x8] sm:$0x1]
        %v547 = vsel %vm421, %v537, %v546
        %548 = vst [vmem:[%s541 + $0x8] sm:$0x1] %v547
      $region40: #{unet_block_forward.2} parent=31 // pred_fallthru
        _
      %v549 = vld [vmem:[#allocation2] sm:$0xf]
      %v550 = vld [vmem:[#allocation2 + $0x4] sm:$0xf]
      %v551 = vld [vmem:[#allocation2 + $0xc] sm:$0xf]
      %v552 = vld [vmem:[#allocation2 + $0x10] sm:$0xf]
      %v553 = vld [vmem:[#allocation2 + $0x18] sm:$0xf]
      %v554 = vld [vmem:[#allocation2 + $0x1c] sm:$0xf]
      %v555 = vld [vmem:[#allocation2 + $0x24] sm:$0xf]
      %v556 = vld [vmem:[#allocation2 + $0x28] sm:$0xf]
      %v557 = vld [vmem:[#allocation2 + $0x30] sm:$0xf]
      %v558 = vld [vmem:[#allocation2 + $0x34] sm:$0xf]
      %v559 = vld [vmem:[#allocation2 + $0x3c] sm:$0xf]
      %v560 = vld [vmem:[#allocation2 + $0x40] sm:$0xf]
      %v561 = vld [vmem:[#allocation2 + $0x48] sm:$0xf]
      %v562 = vld [vmem:[#allocation2 + $0x4c] sm:$0xf]
      %v563 = vld [vmem:[#allocation2 + $0x54] sm:$0xf]
      %v564 = vld [vmem:[#allocation2 + $0x58] sm:$0xf]
      %v565 = vld [vmem:[#allocation2 + $0x8] sm:$0x1]
      %v566 = vld [vmem:[#allocation2 + $0x14] sm:$0x1]
      %v567 = vld [vmem:[#allocation2 + $0x20] sm:$0x1]
      %v568 = vld [vmem:[#allocation2 + $0x2c] sm:$0x1]
      %v569 = vld [vmem:[#allocation2 + $0x38] sm:$0x1]
      %v570 = vld [vmem:[#allocation2 + $0x44] sm:$0x1]
      %v571 = vld [vmem:[#allocation2 + $0x50] sm:$0x1]
      %v572 = vld [vmem:[#allocation2 + $0x5c] sm:$0x1]
      %v573 = vld [vmem:[#allocation2] sm:$0xe]
      %v574 = vld [vmem:[#allocation2 + $0xc] sm:$0xe]
      %v575 = vld [vmem:[#allocation2 + $0x18] sm:$0xe]
      %v576 = vld [vmem:[#allocation2 + $0x24] sm:$0xe]
      %v577 = vld [vmem:[#allocation2 + $0x30] sm:$0xe]
      %v578 = vld [vmem:[#allocation2 + $0x3c] sm:$0xe]
      %v579 = vld [vmem:[#allocation2 + $0x48] sm:$0xe]
      %v580 = vld [vmem:[#allocation2 + $0x54] sm:$0xe]
      %v581 = vld [vmem:[%s412] sm:$0xf]
      %v582 = vld [vmem:[%s412 + $0x4] sm:$0xf]
      %v583 = vld [vmem:[%s412 + $0xc] sm:$0xf]
      %v584 = vld [vmem:[%s412 + $0x10] sm:$0xf]
      %v585 = vld [vmem:[%s412 + $0x18] sm:$0xf]
      %v586 = vld [vmem:[%s412 + $0x1c] sm:$0xf]
      %v587 = vld [vmem:[%s412 + $0x24] sm:$0xf]
      %v588 = vld [vmem:[%s412 + $0x28] sm:$0xf]
      %v589 = vld [vmem:[%s412 + $0x30] sm:$0xf]
      %v590 = vld [vmem:[%s412 + $0x34] sm:$0xf]
      %v591 = vld [vmem:[%s412 + $0x3c] sm:$0xf]
      %v592 = vld [vmem:[%s412 + $0x40] sm:$0xf]
      %v593 = vld [vmem:[%s412 + $0x48] sm:$0xf]
      %v594 = vld [vmem:[%s412 + $0x4c] sm:$0xf]
      %v595 = vld [vmem:[%s412 + $0x54] sm:$0xf]
      %v596 = vld [vmem:[%s412 + $0x58] sm:$0xf]
      %v597 = vld [vmem:[%s412 + $0x8] sm:$0x1]
      %v598 = vld [vmem:[%s412 + $0x14] sm:$0x1]
      %v599 = vld [vmem:[%s412 + $0x20] sm:$0x1]
      %v600 = vld [vmem:[%s412 + $0x2c] sm:$0x1]
      %v601 = vld [vmem:[%s412 + $0x38] sm:$0x1]
      %v602 = vld [vmem:[%s412 + $0x44] sm:$0x1]
      %v603 = vld [vmem:[%s412 + $0x50] sm:$0x1]
      %v604 = vld [vmem:[%s412 + $0x5c] sm:$0x1]
      %v605 = vld [vmem:[%s412] sm:$0xe]
      %v606 = vld [vmem:[%s412 + $0xc] sm:$0xe]
      %v607 = vld [vmem:[%s412 + $0x18] sm:$0xe]
      %v608 = vld [vmem:[%s412 + $0x24] sm:$0xe]
      %v609 = vld [vmem:[%s412 + $0x30] sm:$0xe]
      %v610 = vld [vmem:[%s412 + $0x3c] sm:$0xe]
      %v611 = vld [vmem:[%s412 + $0x48] sm:$0xe]
      %v612 = vld [vmem:[%s412 + $0x54] sm:$0xe]
      %s613 = scalar_lea.vmem [#allocation2], 24
      %v614 = vld [vmem:[%s613] sm:$0xf]
      %v615 = vld [vmem:[%s613 + $0x4] sm:$0xf]
      %v616 = vld [vmem:[%s613 + $0xc] sm:$0xf]
      %v617 = vld [vmem:[%s613 + $0x10] sm:$0xf]
      %v618 = vld [vmem:[%s613 + $0x18] sm:$0xf]
      %v619 = vld [vmem:[%s613 + $0x1c] sm:$0xf]
      %v620 = vld [vmem:[%s613 + $0x24] sm:$0xf]
      %v621 = vld [vmem:[%s613 + $0x28] sm:$0xf]
      %v622 = vld [vmem:[%s613 + $0x30] sm:$0xf]
      %v623 = vld [vmem:[%s613 + $0x34] sm:$0xf]
      %v624 = vld [vmem:[%s613 + $0x3c] sm:$0xf]
      %v625 = vld [vmem:[%s613 + $0x40] sm:$0xf]
      %v626 = vld [vmem:[%s613 + $0x48] sm:$0xf]
      %v627 = vld [vmem:[%s613 + $0x4c] sm:$0xf]
      %v628 = vld [vmem:[%s613 + $0x54] sm:$0xf]
      %v629 = vld [vmem:[%s613 + $0x58] sm:$0xf]
      %v630 = vld [vmem:[%s613 + $0x8] sm:$0x1]
      %v631 = vld [vmem:[%s613 + $0x14] sm:$0x1]
      %v632 = vld [vmem:[%s613 + $0x20] sm:$0x1]
      %v633 = vld [vmem:[%s613 + $0x2c] sm:$0x1]
      %v634 = vld [vmem:[%s613 + $0x38] sm:$0x1]
      %v635 = vld [vmem:[%s613 + $0x44] sm:$0x1]
      %v636 = vld [vmem:[%s613 + $0x50] sm:$0x1]
      %v637 = vld [vmem:[%s613 + $0x5c] sm:$0x1]
      %v638 = vld [vmem:[%s613] sm:$0xe]
      %v639 = vld [vmem:[%s613 + $0xc] sm:$0xe]
      %v640 = vld [vmem:[%s613 + $0x18] sm:$0xe]
      %v641 = vld [vmem:[%s613 + $0x24] sm:$0xe]
      %v642 = vld [vmem:[%s613 + $0x30] sm:$0xe]
      %v643 = vld [vmem:[%s613 + $0x3c] sm:$0xe]
      %v644 = vld [vmem:[%s613 + $0x48] sm:$0xe]
      %v645 = vld [vmem:[%s613 + $0x54] sm:$0xe]
      %v662 = vunpack.c.l.b16 %v549
      %v663 = vunpack.c.l.b16 %v550
      %v664 = vunpack.c.l.b16 %v551
      %v665 = vunpack.c.l.b16 %v552
      %v666 = vunpack.c.l.b16 %v553
      %v667 = vunpack.c.l.b16 %v554
      %v668 = vunpack.c.l.b16 %v555
      %v669 = vunpack.c.l.b16 %v556
      %v670 = vunpack.c.l.b16 %v557
      %v671 = vunpack.c.l.b16 %v558
      %v672 = vunpack.c.l.b16 %v559
      %v673 = vunpack.c.l.b16 %v560
      %v674 = vunpack.c.l.b16 %v561
      %v675 = vunpack.c.l.b16 %v562
      %v676 = vunpack.c.l.b16 %v563
      %v677 = vunpack.c.l.b16 %v564
      %v678 = vpack.c.b16 %v663, %v662
      %v679 = vpack.c.b16 %v665, %v664
      %v680 = vpack.c.b16 %v667, %v666
      %v681 = vpack.c.b16 %v669, %v668
      %v682 = vpack.c.b16 %v671, %v670
      %v683 = vpack.c.b16 %v673, %v672
      %v684 = vpack.c.b16 %v675, %v674
      %v685 = vpack.c.b16 %v677, %v676
      %v694 = vunpack.c.l.b16 %v565
      %v695 = vunpack.c.l.b16 %v566
      %v696 = vunpack.c.l.b16 %v567
      %v697 = vunpack.c.l.b16 %v568
      %v698 = vunpack.c.l.b16 %v569
      %v699 = vunpack.c.l.b16 %v570
      %v700 = vunpack.c.l.b16 %v571
      %v701 = vunpack.c.l.b16 %v572
      %v702 = vpack.c.b16 %v694, %v694
      %v703 = vpack.c.b16 %v695, %v695
      %v704 = vpack.c.b16 %v696, %v696
      %v705 = vpack.c.b16 %v697, %v697
      %v706 = vpack.c.b16 %v698, %v698
      %v707 = vpack.c.b16 %v699, %v699
      %v708 = vpack.c.b16 %v700, %v700
      %v709 = vpack.c.b16 %v701, %v701
      %vm710 = vsmask.f32 7424
      %v712 = vshrl.u32 %v678, 16
      %v714 = vshll.u32 %v678, 16
      %v716 = vrot.slane %v714, 1
      %v717 = vor.u32 %v712, %v716
      %v719 = vshll.u32 %v702, 16
      %v721 = vrot.slane %v719, 1
      %v722 = vsel %vm710, %v717, %v721
      %v724 = vshrl.u32 %v679, 16
      %v726 = vshll.u32 %v679, 16
      %v728 = vrot.slane %v726, 1
      %v729 = vor.u32 %v724, %v728
      %v731 = vshll.u32 %v703, 16
      %v733 = vrot.slane %v731, 1
      %v734 = vsel %vm710, %v729, %v733
      %v736 = vshrl.u32 %v680, 16
      %v738 = vshll.u32 %v680, 16
      %v740 = vrot.slane %v738, 1
      %v741 = vor.u32 %v736, %v740
      %v743 = vshll.u32 %v704, 16
      %v745 = vrot.slane %v743, 1
      %v746 = vsel %vm710, %v741, %v745
      %v748 = vshrl.u32 %v681, 16
      %v750 = vshll.u32 %v681, 16
      %v752 = vrot.slane %v750, 1
      %v753 = vor.u32 %v748, %v752
      %v755 = vshll.u32 %v705, 16
      %v757 = vrot.slane %v755, 1
      %v758 = vsel %vm710, %v753, %v757
      %v760 = vshrl.u32 %v682, 16
      %v762 = vshll.u32 %v682, 16
      %v764 = vrot.slane %v762, 1
      %v765 = vor.u32 %v760, %v764
      %v767 = vshll.u32 %v706, 16
      %v769 = vrot.slane %v767, 1
      %v770 = vsel %vm710, %v765, %v769
      %v772 = vshrl.u32 %v683, 16
      %v774 = vshll.u32 %v683, 16
      %v776 = vrot.slane %v774, 1
      %v777 = vor.u32 %v772, %v776
      %v779 = vshll.u32 %v707, 16
      %v781 = vrot.slane %v779, 1
      %v782 = vsel %vm710, %v777, %v781
      %v784 = vshrl.u32 %v684, 16
      %v786 = vshll.u32 %v684, 16
      %v788 = vrot.slane %v786, 1
      %v789 = vor.u32 %v784, %v788
      %v791 = vshll.u32 %v708, 16
      %v793 = vrot.slane %v791, 1
      %v794 = vsel %vm710, %v789, %v793
      %v796 = vshrl.u32 %v685, 16
      %v798 = vshll.u32 %v685, 16
      %v800 = vrot.slane %v798, 1
      %v801 = vor.u32 %v796, %v800
      %v803 = vshll.u32 %v709, 16
      %v805 = vrot.slane %v803, 1
      %v806 = vsel %vm710, %v801, %v805
      %807 = vrot.lane.b32.xlu0 %v722, 16
      %v808 = vpop.permute.xlu0 %807
      %809 = vrot.lane.b32.xlu0 %v734, 16
      %v810 = vpop.permute.xlu0 %809
      %811 = vrot.lane.b32.xlu0 %v746, 16
      %v812 = vpop.permute.xlu0 %811
      %813 = vrot.lane.b32.xlu0 %v758, 16
      %v814 = vpop.permute.xlu0 %813
      %815 = vrot.lane.b32.xlu0 %v770, 16
      %v816 = vpop.permute.xlu0 %815
      %817 = vrot.lane.b32.xlu0 %v782, 16
      %v818 = vpop.permute.xlu0 %817
      %819 = vrot.lane.b32.xlu0 %v794, 16
      %v820 = vpop.permute.xlu0 %819
      %821 = vrot.lane.b32.xlu0 %v806, 16
      %v822 = vpop.permute.xlu0 %821
      %v831 = vunpack.c.l.b16 %v573
      %v832 = vunpack.c.l.b16 %v574
      %v833 = vunpack.c.l.b16 %v575
      %v834 = vunpack.c.l.b16 %v576
      %v835 = vunpack.c.l.b16 %v577
      %v836 = vunpack.c.l.b16 %v578
      %v837 = vunpack.c.l.b16 %v579
      %v838 = vunpack.c.l.b16 %v580
      %v839 = vpack.c.b16 %v663, %v831
      %v840 = vpack.c.b16 %v665, %v832
      %v841 = vpack.c.b16 %v667, %v833
      %v842 = vpack.c.b16 %v669, %v834
      %v843 = vpack.c.b16 %v671, %v835
      %v844 = vpack.c.b16 %v673, %v836
      %v845 = vpack.c.b16 %v675, %v837
      %v846 = vpack.c.b16 %v677, %v838
      %vm847 = vcmask 1046528
      %v848 = vrot.slane %v839, 1
      %v849 = vrot.slane %v702, 1
      %v850 = vsel %vm847, %v848, %v849
      %v851 = vrot.slane %v840, 1
      %v852 = vrot.slane %v703, 1
      %v853 = vsel %vm847, %v851, %v852
      %v854 = vrot.slane %v841, 1
      %v855 = vrot.slane %v704, 1
      %v856 = vsel %vm847, %v854, %v855
      %v857 = vrot.slane %v842, 1
      %v858 = vrot.slane %v705, 1
      %v859 = vsel %vm847, %v857, %v858
      %v860 = vrot.slane %v843, 1
      %v861 = vrot.slane %v706, 1
      %v862 = vsel %vm847, %v860, %v861
      %v863 = vrot.slane %v844, 1
      %v864 = vrot.slane %v707, 1
      %v865 = vsel %vm847, %v863, %v864
      %v866 = vrot.slane %v845, 1
      %v867 = vrot.slane %v708, 1
      %v868 = vsel %vm847, %v866, %v867
      %v869 = vrot.slane %v846, 1
      %v870 = vrot.slane %v709, 1
      %v871 = vsel %vm847, %v869, %v870
      %872 = vrot.lane.b32.xlu0 %v850, 32
      %v873 = vpop.permute.xlu0 %872
      %874 = vrot.lane.b32.xlu0 %v853, 32
      %v875 = vpop.permute.xlu0 %874
      %876 = vrot.lane.b32.xlu0 %v856, 32
      %v877 = vpop.permute.xlu0 %876
      %878 = vrot.lane.b32.xlu0 %v859, 32
      %v879 = vpop.permute.xlu0 %878
      %880 = vrot.lane.b32.xlu0 %v862, 32
      %v881 = vpop.permute.xlu0 %880
      %882 = vrot.lane.b32.xlu0 %v865, 32
      %v883 = vpop.permute.xlu0 %882
      %884 = vrot.lane.b32.xlu0 %v868, 32
      %v885 = vpop.permute.xlu0 %884
      %886 = vrot.lane.b32.xlu0 %v871, 32
      %v887 = vpop.permute.xlu0 %886
      %v904 = vunpack.c.l.b16 %v581
      %v905 = vunpack.c.l.b16 %v582
      %v906 = vunpack.c.l.b16 %v583
      %v907 = vunpack.c.l.b16 %v584
      %v908 = vunpack.c.l.b16 %v585
      %v909 = vunpack.c.l.b16 %v586
      %v910 = vunpack.c.l.b16 %v587
      %v911 = vunpack.c.l.b16 %v588
      %v912 = vunpack.c.l.b16 %v589
      %v913 = vunpack.c.l.b16 %v590
      %v914 = vunpack.c.l.b16 %v591
      %v915 = vunpack.c.l.b16 %v592
      %v916 = vunpack.c.l.b16 %v593
      %v917 = vunpack.c.l.b16 %v594
      %v918 = vunpack.c.l.b16 %v595
      %v919 = vunpack.c.l.b16 %v596
      %v920 = vpack.c.b16 %v905, %v904
      %v921 = vpack.c.b16 %v907, %v906
      %v922 = vpack.c.b16 %v909, %v908
      %v923 = vpack.c.b16 %v911, %v910
      %v924 = vpack.c.b16 %v913, %v912
      %v925 = vpack.c.b16 %v915, %v914
      %v926 = vpack.c.b16 %v917, %v916
      %v927 = vpack.c.b16 %v919, %v918
      %928 = vrot.lane.b32.xlu0 %v920, 48
      %v929 = vpop.permute.xlu0 %928
      %930 = vrot.lane.b32.xlu0 %v921, 48
      %v931 = vpop.permute.xlu0 %930
      %932 = vrot.lane.b32.xlu0 %v922, 48
      %v933 = vpop.permute.xlu0 %932
      %934 = vrot.lane.b32.xlu0 %v923, 48
      %v935 = vpop.permute.xlu0 %934
      %936 = vrot.lane.b32.xlu0 %v924, 48
      %v937 = vpop.permute.xlu0 %936
      %938 = vrot.lane.b32.xlu0 %v925, 48
      %v939 = vpop.permute.xlu0 %938
      %940 = vrot.lane.b32.xlu0 %v926, 48
      %v941 = vpop.permute.xlu0 %940
      %942 = vrot.lane.b32.xlu0 %v927, 48
      %v943 = vpop.permute.xlu0 %942
      %v952 = vunpack.c.l.b16 %v597
      %v953 = vunpack.c.l.b16 %v598
      %v954 = vunpack.c.l.b16 %v599
      %v955 = vunpack.c.l.b16 %v600
      %v956 = vunpack.c.l.b16 %v601
      %v957 = vunpack.c.l.b16 %v602
      %v958 = vunpack.c.l.b16 %v603
      %v959 = vunpack.c.l.b16 %v604
      %v960 = vpack.c.b16 %v952, %v952
      %v961 = vpack.c.b16 %v953, %v953
      %v962 = vpack.c.b16 %v954, %v954
      %v963 = vpack.c.b16 %v955, %v955
      %v964 = vpack.c.b16 %v956, %v956
      %v965 = vpack.c.b16 %v957, %v957
      %v966 = vpack.c.b16 %v958, %v958
      %v967 = vpack.c.b16 %v959, %v959
      %v969 = vshrl.u32 %v920, 16
      %v971 = vshll.u32 %v920, 16
      %v973 = vrot.slane %v971, 1
      %v974 = vor.u32 %v969, %v973
      %v976 = vshll.u32 %v960, 16
      %v978 = vrot.slane %v976, 1
      %v979 = vsel %vm710, %v974, %v978
      %v981 = vshrl.u32 %v921, 16
      %v983 = vshll.u32 %v921, 16
      %v985 = vrot.slane %v983, 1
      %v986 = vor.u32 %v981, %v985
      %v988 = vshll.u32 %v961, 16
      %v990 = vrot.slane %v988, 1
      %v991 = vsel %vm710, %v986, %v990
      %v993 = vshrl.u32 %v922, 16
      %v995 = vshll.u32 %v922, 16
      %v997 = vrot.slane %v995, 1
      %v998 = vor.u32 %v993, %v997
      %v1000 = vshll.u32 %v962, 16
      %v1002 = vrot.slane %v1000, 1
      %v1003 = vsel %vm710, %v998, %v1002
      %v1005 = vshrl.u32 %v923, 16
      %v1007 = vshll.u32 %v923, 16
      %v1009 = vrot.slane %v1007, 1
      %v1010 = vor.u32 %v1005, %v1009
      %v1012 = vshll.u32 %v963, 16
      %v1014 = vrot.slane %v1012, 1
      %v1015 = vsel %vm710, %v1010, %v1014
      %v1017 = vshrl.u32 %v924, 16
      %v1019 = vshll.u32 %v924, 16
      %v1021 = vrot.slane %v1019, 1
      %v1022 = vor.u32 %v1017, %v1021
      %v1024 = vshll.u32 %v964, 16
      %v1026 = vrot.slane %v1024, 1
      %v1027 = vsel %vm710, %v1022, %v1026
      %v1029 = vshrl.u32 %v925, 16
      %v1031 = vshll.u32 %v925, 16
      %v1033 = vrot.slane %v1031, 1
      %v1034 = vor.u32 %v1029, %v1033
      %v1036 = vshll.u32 %v965, 16
      %v1038 = vrot.slane %v1036, 1
      %v1039 = vsel %vm710, %v1034, %v1038
      %v1041 = vshrl.u32 %v926, 16
      %v1043 = vshll.u32 %v926, 16
      %v1045 = vrot.slane %v1043, 1
      %v1046 = vor.u32 %v1041, %v1045
      %v1048 = vshll.u32 %v966, 16
      %v1050 = vrot.slane %v1048, 1
      %v1051 = vsel %vm710, %v1046, %v1050
      %v1053 = vshrl.u32 %v927, 16
      %v1055 = vshll.u32 %v927, 16
      %v1057 = vrot.slane %v1055, 1
      %v1058 = vor.u32 %v1053, %v1057
      %v1060 = vshll.u32 %v967, 16
      %v1062 = vrot.slane %v1060, 1
      %v1063 = vsel %vm710, %v1058, %v1062
      %1064 = vrot.lane.b32.xlu0 %v979, 64
      %v1065 = vpop.permute.xlu0 %1064
      %1066 = vrot.lane.b32.xlu0 %v991, 64
      %v1067 = vpop.permute.xlu0 %1066
      %1068 = vrot.lane.b32.xlu0 %v1003, 64
      %v1069 = vpop.permute.xlu0 %1068
      %1070 = vrot.lane.b32.xlu0 %v1015, 64
      %v1071 = vpop.permute.xlu0 %1070
      %1072 = vrot.lane.b32.xlu0 %v1027, 64
      %v1073 = vpop.permute.xlu0 %1072
      %1074 = vrot.lane.b32.xlu0 %v1039, 64
      %v1075 = vpop.permute.xlu0 %1074
      %1076 = vrot.lane.b32.xlu0 %v1051, 64
      %v1077 = vpop.permute.xlu0 %1076
      %1078 = vrot.lane.b32.xlu0 %v1063, 64
      %v1079 = vpop.permute.xlu0 %1078
      %v1088 = vunpack.c.l.b16 %v605
      %v1089 = vunpack.c.l.b16 %v606
      %v1090 = vunpack.c.l.b16 %v607
      %v1091 = vunpack.c.l.b16 %v608
      %v1092 = vunpack.c.l.b16 %v609
      %v1093 = vunpack.c.l.b16 %v610
      %v1094 = vunpack.c.l.b16 %v611
      %v1095 = vunpack.c.l.b16 %v612
      %v1096 = vpack.c.b16 %v905, %v1088
      %v1097 = vpack.c.b16 %v907, %v1089
      %v1098 = vpack.c.b16 %v909, %v1090
      %v1099 = vpack.c.b16 %v911, %v1091
      %v1100 = vpack.c.b16 %v913, %v1092
      %v1101 = vpack.c.b16 %v915, %v1093
      %v1102 = vpack.c.b16 %v917, %v1094
      %v1103 = vpack.c.b16 %v919, %v1095
      %v1104 = vrot.slane %v1096, 1
      %v1105 = vrot.slane %v960, 1
      %v1106 = vsel %vm847, %v1104, %v1105
      %v1107 = vrot.slane %v1097, 1
      %v1108 = vrot.slane %v961, 1
      %v1109 = vsel %vm847, %v1107, %v1108
      %v1110 = vrot.slane %v1098, 1
      %v1111 = vrot.slane %v962, 1
      %v1112 = vsel %vm847, %v1110, %v1111
      %v1113 = vrot.slane %v1099, 1
      %v1114 = vrot.slane %v963, 1
      %v1115 = vsel %vm847, %v1113, %v1114
      %v1116 = vrot.slane %v1100, 1
      %v1117 = vrot.slane %v964, 1
      %v1118 = vsel %vm847, %v1116, %v1117
      %v1119 = vrot.slane %v1101, 1
      %v1120 = vrot.slane %v965, 1
      %v1121 = vsel %vm847, %v1119, %v1120
      %v1122 = vrot.slane %v1102, 1
      %v1123 = vrot.slane %v966, 1
      %v1124 = vsel %vm847, %v1122, %v1123
      %v1125 = vrot.slane %v1103, 1
      %v1126 = vrot.slane %v967, 1
      %v1127 = vsel %vm847, %v1125, %v1126
      %1128 = vrot.lane.b32.xlu0 %v1106, 80
      %v1129 = vpop.permute.xlu0 %1128
      %1130 = vrot.lane.b32.xlu0 %v1109, 80
      %v1131 = vpop.permute.xlu0 %1130
      %1132 = vrot.lane.b32.xlu0 %v1112, 80
      %v1133 = vpop.permute.xlu0 %1132
      %1134 = vrot.lane.b32.xlu0 %v1115, 80
      %v1135 = vpop.permute.xlu0 %1134
      %1136 = vrot.lane.b32.xlu0 %v1118, 80
      %v1137 = vpop.permute.xlu0 %1136
      %1138 = vrot.lane.b32.xlu0 %v1121, 80
      %v1139 = vpop.permute.xlu0 %1138
      %1140 = vrot.lane.b32.xlu0 %v1124, 80
      %v1141 = vpop.permute.xlu0 %1140
      %1142 = vrot.lane.b32.xlu0 %v1127, 80
      %v1143 = vpop.permute.xlu0 %1142
      %v1160 = vunpack.c.l.b16 %v614
      %v1161 = vunpack.c.l.b16 %v615
      %v1162 = vunpack.c.l.b16 %v616
      %v1163 = vunpack.c.l.b16 %v617
      %v1164 = vunpack.c.l.b16 %v618
      %v1165 = vunpack.c.l.b16 %v619
      %v1166 = vunpack.c.l.b16 %v620
      %v1167 = vunpack.c.l.b16 %v621
      %v1168 = vunpack.c.l.b16 %v622
      %v1169 = vunpack.c.l.b16 %v623
      %v1170 = vunpack.c.l.b16 %v624
      %v1171 = vunpack.c.l.b16 %v625
      %v1172 = vunpack.c.l.b16 %v626
      %v1173 = vunpack.c.l.b16 %v627
      %v1174 = vunpack.c.l.b16 %v628
      %v1175 = vunpack.c.l.b16 %v629
      %v1176 = vpack.c.b16 %v1161, %v1160
      %v1177 = vpack.c.b16 %v1163, %v1162
      %v1178 = vpack.c.b16 %v1165, %v1164
      %v1179 = vpack.c.b16 %v1167, %v1166
      %v1180 = vpack.c.b16 %v1169, %v1168
      %v1181 = vpack.c.b16 %v1171, %v1170
      %v1182 = vpack.c.b16 %v1173, %v1172
      %v1183 = vpack.c.b16 %v1175, %v1174
      %1184 = vrot.lane.b32.xlu0 %v1176, 96
      %v1185 = vpop.permute.xlu0 %1184
      %1186 = vrot.lane.b32.xlu0 %v1177, 96
      %v1187 = vpop.permute.xlu0 %1186
      %1188 = vrot.lane.b32.xlu0 %v1178, 96
      %v1189 = vpop.permute.xlu0 %1188
      %1190 = vrot.lane.b32.xlu0 %v1179, 96
      %v1191 = vpop.permute.xlu0 %1190
      %1192 = vrot.lane.b32.xlu0 %v1180, 96
      %v1193 = vpop.permute.xlu0 %1192
      %1194 = vrot.lane.b32.xlu0 %v1181, 96
      %v1195 = vpop.permute.xlu0 %1194
      %1196 = vrot.lane.b32.xlu0 %v1182, 96
      %v1197 = vpop.permute.xlu0 %1196
      %1198 = vrot.lane.b32.xlu0 %v1183, 96
      %v1199 = vpop.permute.xlu0 %1198
      %v1208 = vunpack.c.l.b16 %v630
      %v1209 = vunpack.c.l.b16 %v631
      %v1210 = vunpack.c.l.b16 %v632
      %v1211 = vunpack.c.l.b16 %v633
      %v1212 = vunpack.c.l.b16 %v634
      %v1213 = vunpack.c.l.b16 %v635
      %v1214 = vunpack.c.l.b16 %v636
      %v1215 = vunpack.c.l.b16 %v637
      %v1216 = vpack.c.b16 %v1208, %v1208
      %v1217 = vpack.c.b16 %v1209, %v1209
      %v1218 = vpack.c.b16 %v1210, %v1210
      %v1219 = vpack.c.b16 %v1211, %v1211
      %v1220 = vpack.c.b16 %v1212, %v1212
      %v1221 = vpack.c.b16 %v1213, %v1213
      %v1222 = vpack.c.b16 %v1214, %v1214
      %v1223 = vpack.c.b16 %v1215, %v1215
      %v1225 = vshrl.u32 %v1176, 16
      %v1227 = vshll.u32 %v1176, 16
      %v1229 = vrot.slane %v1227, 1
      %v1230 = vor.u32 %v1225, %v1229
      %v1232 = vshll.u32 %v1216, 16
      %v1234 = vrot.slane %v1232, 1
      %v1235 = vsel %vm710, %v1230, %v1234
      %v1237 = vshrl.u32 %v1177, 16
      %v1239 = vshll.u32 %v1177, 16
      %v1241 = vrot.slane %v1239, 1
      %v1242 = vor.u32 %v1237, %v1241
      %v1244 = vshll.u32 %v1217, 16
      %v1246 = vrot.slane %v1244, 1
      %v1247 = vsel %vm710, %v1242, %v1246
      %v1249 = vshrl.u32 %v1178, 16
      %v1251 = vshll.u32 %v1178, 16
      %v1253 = vrot.slane %v1251, 1
      %v1254 = vor.u32 %v1249, %v1253
      %v1256 = vshll.u32 %v1218, 16
      %v1258 = vrot.slane %v1256, 1
      %v1259 = vsel %vm710, %v1254, %v1258
      %v1261 = vshrl.u32 %v1179, 16
      %v1263 = vshll.u32 %v1179, 16
      %v1265 = vrot.slane %v1263, 1
      %v1266 = vor.u32 %v1261, %v1265
      %v1268 = vshll.u32 %v1219, 16
      %v1270 = vrot.slane %v1268, 1
      %v1271 = vsel %vm710, %v1266, %v1270
      %v1273 = vshrl.u32 %v1180, 16
      %v1275 = vshll.u32 %v1180, 16
      %v1277 = vrot.slane %v1275, 1
      %v1278 = vor.u32 %v1273, %v1277
      %v1280 = vshll.u32 %v1220, 16
      %v1282 = vrot.slane %v1280, 1
      %v1283 = vsel %vm710, %v1278, %v1282
      %v1285 = vshrl.u32 %v1181, 16
      %v1287 = vshll.u32 %v1181, 16
      %v1289 = vrot.slane %v1287, 1
      %v1290 = vor.u32 %v1285, %v1289
      %v1292 = vshll.u32 %v1221, 16
      %v1294 = vrot.slane %v1292, 1
      %v1295 = vsel %vm710, %v1290, %v1294
      %v1297 = vshrl.u32 %v1182, 16
      %v1299 = vshll.u32 %v1182, 16
      %v1301 = vrot.slane %v1299, 1
      %v1302 = vor.u32 %v1297, %v1301
      %v1304 = vshll.u32 %v1222, 16
      %v1306 = vrot.slane %v1304, 1
      %v1307 = vsel %vm710, %v1302, %v1306
      %v1309 = vshrl.u32 %v1183, 16
      %v1311 = vshll.u32 %v1183, 16
      %v1313 = vrot.slane %v1311, 1
      %v1314 = vor.u32 %v1309, %v1313
      %v1316 = vshll.u32 %v1223, 16
      %v1318 = vrot.slane %v1316, 1
      %v1319 = vsel %vm710, %v1314, %v1318
      %1320 = vrot.lane.b32.xlu0 %v1235, 112
      %v1321 = vpop.permute.xlu0 %1320
      %1322 = vrot.lane.b32.xlu0 %v1247, 112
      %v1323 = vpop.permute.xlu0 %1322
      %1324 = vrot.lane.b32.xlu0 %v1259, 112
      %v1325 = vpop.permute.xlu0 %1324
      %1326 = vrot.lane.b32.xlu0 %v1271, 112
      %v1327 = vpop.permute.xlu0 %1326
      %1328 = vrot.lane.b32.xlu0 %v1283, 112
      %v1329 = vpop.permute.xlu0 %1328
      %1330 = vrot.lane.b32.xlu0 %v1295, 112
      %v1331 = vpop.permute.xlu0 %1330
      %1332 = vrot.lane.b32.xlu0 %v1307, 112
      %v1333 = vpop.permute.xlu0 %1332
      %1334 = vrot.lane.b32.xlu0 %v1319, 112
      %v1335 = vpop.permute.xlu0 %1334
      %v1344 = vunpack.c.l.b16 %v638
      %v1345 = vunpack.c.l.b16 %v639
      %v1346 = vunpack.c.l.b16 %v640
      %v1347 = vunpack.c.l.b16 %v641
      %v1348 = vunpack.c.l.b16 %v642
      %v1349 = vunpack.c.l.b16 %v643
      %v1350 = vunpack.c.l.b16 %v644
      %v1351 = vunpack.c.l.b16 %v645
      %v1352 = vpack.c.b16 %v1161, %v1344
      %v1353 = vpack.c.b16 %v1163, %v1345
      %v1354 = vpack.c.b16 %v1165, %v1346
      %v1355 = vpack.c.b16 %v1167, %v1347
      %v1356 = vpack.c.b16 %v1169, %v1348
      %v1357 = vpack.c.b16 %v1171, %v1349
      %v1358 = vpack.c.b16 %v1173, %v1350
      %v1359 = vpack.c.b16 %v1175, %v1351
      %v1360 = vrot.slane %v1352, 1
      %v1361 = vrot.slane %v1216, 1
      %v1362 = vsel %vm847, %v1360, %v1361
      %v1363 = vrot.slane %v1353, 1
      %v1364 = vrot.slane %v1217, 1
      %v1365 = vsel %vm847, %v1363, %v1364
      %v1366 = vrot.slane %v1354, 1
      %v1367 = vrot.slane %v1218, 1
      %v1368 = vsel %vm847, %v1366, %v1367
      %v1369 = vrot.slane %v1355, 1
      %v1370 = vrot.slane %v1219, 1
      %v1371 = vsel %vm847, %v1369, %v1370
      %v1372 = vrot.slane %v1356, 1
      %v1373 = vrot.slane %v1220, 1
      %v1374 = vsel %vm847, %v1372, %v1373
      %v1375 = vrot.slane %v1357, 1
      %v1376 = vrot.slane %v1221, 1
      %v1377 = vsel %vm847, %v1375, %v1376
      %v1378 = vrot.slane %v1358, 1
      %v1379 = vrot.slane %v1222, 1
      %v1380 = vsel %vm847, %v1378, %v1379
      %v1381 = vrot.slane %v1359, 1
      %v1382 = vrot.slane %v1223, 1
      %v1383 = vsel %vm847, %v1381, %v1382
      %vm1384 = vcmask 130048
      %v1386 = vsel %vm1384, %v678, %v808
      %v1388 = vsel %vm1384, %v679, %v810
      %v1390 = vsel %vm1384, %v680, %v812
      %v1392 = vsel %vm1384, %v681, %v814
      %v1394 = vsel %vm1384, %v682, %v816
      %v1396 = vsel %vm1384, %v683, %v818
      %v1398 = vsel %vm1384, %v684, %v820
      %v1400 = vsel %vm1384, %v685, %v822
      %vm1401 = vcmask 261120
      %v1403 = vsel %vm1401, %v1386, %v873
      %v1405 = vsel %vm1401, %v1388, %v875
      %v1407 = vsel %vm1401, %v1390, %v877
      %v1409 = vsel %vm1401, %v1392, %v879
      %v1411 = vsel %vm1401, %v1394, %v881
      %v1413 = vsel %vm1401, %v1396, %v883
      %v1415 = vsel %vm1401, %v1398, %v885
      %v1417 = vsel %vm1401, %v1400, %v887
      %vm1418 = vcmask 392192
      %v1420 = vsel %vm1418, %v1403, %v929
      %v1422 = vsel %vm1418, %v1405, %v931
      %v1424 = vsel %vm1418, %v1407, %v933
      %v1426 = vsel %vm1418, %v1409, %v935
      %v1428 = vsel %vm1418, %v1411, %v937
      %v1430 = vsel %vm1418, %v1413, %v939
      %v1432 = vsel %vm1418, %v1415, %v941
      %v1434 = vsel %vm1418, %v1417, %v943
      %vm1435 = vcmask 523264
      %v1437 = vsel %vm1435, %v1420, %v1065
      %v1439 = vsel %vm1435, %v1422, %v1067
      %v1441 = vsel %vm1435, %v1424, %v1069
      %v1443 = vsel %vm1435, %v1426, %v1071
      %v1445 = vsel %vm1435, %v1428, %v1073
      %v1447 = vsel %vm1435, %v1430, %v1075
      %v1449 = vsel %vm1435, %v1432, %v1077
      %v1451 = vsel %vm1435, %v1434, %v1079
      %vm1452 = vcmask 654336
      %v1454 = vsel %vm1452, %v1437, %v1129
      %v1456 = vsel %vm1452, %v1439, %v1131
      %v1458 = vsel %vm1452, %v1441, %v1133
      %v1460 = vsel %vm1452, %v1443, %v1135
      %v1462 = vsel %vm1452, %v1445, %v1137
      %v1464 = vsel %vm1452, %v1447, %v1139
      %v1466 = vsel %vm1452, %v1449, %v1141
      %v1468 = vsel %vm1452, %v1451, %v1143
      %vm1469 = vcmask 785408
      %v1471 = vsel %vm1469, %v1454, %v1185
      %v1473 = vsel %vm1469, %v1456, %v1187
      %v1475 = vsel %vm1469, %v1458, %v1189
      %v1477 = vsel %vm1469, %v1460, %v1191
      %v1479 = vsel %vm1469, %v1462, %v1193
      %v1481 = vsel %vm1469, %v1464, %v1195
      %v1483 = vsel %vm1469, %v1466, %v1197
      %v1485 = vsel %vm1469, %v1468, %v1199
      %vm1486 = vcmask 916480
      %v1488 = vsel %vm1486, %v1471, %v1321
      %v1491 = vsel %vm1486, %v1473, %v1323
      %v1494 = vsel %vm1486, %v1475, %v1325
      %v1497 = vsel %vm1486, %v1477, %v1327
      %v1500 = vsel %vm1486, %v1479, %v1329
      %v1503 = vsel %vm1486, %v1481, %v1331
      %v1506 = vsel %vm1486, %v1483, %v1333
      %v1509 = vsel %vm1486, %v1485, %v1335
      %v1511 = vld [vmem:[%s1] sm:$0xf]
      %v1512 = vld [vmem:[%s1 + $0x4] sm:$0xf]
      %v1513 = vld [vmem:[%s1 + $0x8] sm:$0xf]
      %v1514 = vld [vmem:[%s1 + $0xc] sm:$0xf]
      %v1515 = vld [vmem:[%s1 + $0x10] sm:$0xf]
      %v1516 = vld [vmem:[%s1 + $0x14] sm:$0xf]
      %v1517 = vld [vmem:[%s1 + $0x18] sm:$0xf]
      %v1518 = vld [vmem:[%s1 + $0x1c] sm:$0xf]
      %v1519 = vld [vmem:[%s1 + $0x20] sm:$0xf]
      %v1520 = vld [vmem:[%s1 + $0x24] sm:$0xf]
      %v1521 = vld [vmem:[%s1 + $0x28] sm:$0xf]
      %v1522 = vld [vmem:[%s1 + $0x2c] sm:$0xf]
      %v1523 = vld [vmem:[%s1 + $0x30] sm:$0xf]
      %v1524 = vld [vmem:[%s1 + $0x34] sm:$0xf]
      %v1525 = vld [vmem:[%s1 + $0x38] sm:$0xf]
      %v1526 = vld [vmem:[%s1 + $0x3c] sm:$0xf]
      %v1527 = vld [vmem:[%s1 + $0x40] sm:$0xf]
      %v1528 = vld [vmem:[%s1 + $0x44] sm:$0xf]
      %v1529 = vld [vmem:[%s2] sm:$0x1]
      %v1531 = vperm.slane %v1529, 0
      %v1551 = vunpack.c.l.b16 %v1511
      %v1552 = vunpack.c.l.b16 %v1512
      %v1553 = vunpack.c.l.b16 %v1513
      %v1554 = vunpack.c.l.b16 %v1514
      %v1555 = vunpack.c.l.b16 %v1515
      %v1556 = vunpack.c.l.b16 %v1516
      %v1557 = vunpack.c.l.b16 %v1517
      %v1558 = vunpack.c.l.b16 %v1518
      %v1559 = vunpack.c.l.b16 %v1519
      %v1560 = vunpack.c.l.b16 %v1520
      %v1561 = vunpack.c.l.b16 %v1521
      %v1562 = vunpack.c.l.b16 %v1522
      %v1563 = vunpack.c.l.b16 %v1523
      %v1564 = vunpack.c.l.b16 %v1524
      %v1565 = vunpack.c.l.b16 %v1525
      %v1566 = vunpack.c.l.b16 %v1526
      %v1567 = vunpack.c.l.b16 %v1527
      %v1568 = vunpack.c.l.b16 %v1528
      %v1569 = vpack.c.b16 %v1552, %v1551
      %v1570 = vpack.c.b16 %v1554, %v1553
      %v1571 = vpack.c.b16 %v1556, %v1555
      %v1572 = vpack.c.b16 %v1558, %v1557
      %v1573 = vpack.c.b16 %v1560, %v1559
      %v1574 = vpack.c.b16 %v1562, %v1561
      %v1575 = vpack.c.b16 %v1564, %v1563
      %v1576 = vpack.c.b16 %v1566, %v1565
      %v1577 = vpack.c.b16 %v1568, %v1567
      %v1588 = vsel %vm1384, %v1362, 0
      %v1591 = vsel %vm1384, %v1365, 0
      %v1594 = vsel %vm1384, %v1368, 0
      %v1597 = vsel %vm1384, %v1371, 0
      %v1600 = vsel %vm1384, %v1374, 0
      %v1603 = vsel %vm1384, %v1377, 0
      %v1606 = vsel %vm1384, %v1380, 0
      %v1609 = vsel %vm1384, %v1383, 0
      %1611 = vmatpush.bf16.msra.mxu0 %v1576
      %1612 = vmatpush.bf16.msra.mxu0 %v1575
      %1613 = vmatpush.bf16.msra.mxu0 %v1574
      %1614 = vmatpush.bf16.msra.mxu0 %v1573
      %1615 = vmatpush.bf16.msra.mxu0 %v1572
      %1616 = vmatpush.bf16.msra.mxu0 %v1571
      %1617 = vmatpush.bf16.msra.mxu0 %v1570
      %1618 = vmatpush.bf16.msra.mxu0 %v1569
      %1619 = vmatmul.bf16.gmra.mxu0 %v1488
      %v1620 = vpop.f32.mrf.mxu0
      %v1621 = vadd.f32 %v1531, %v1620
      %v1622 = vpop.f32.mrf.mxu0
      %v1623 = vadd.f32 %v1531, %v1622
      %1624 = vmatmul.bf16.gmra.mxu0 %v1491
      %v1625 = vpop.f32.mrf.mxu0
      %v1626 = vadd.f32 %v1531, %v1625
      %v1627 = vpop.f32.mrf.mxu0
      %v1628 = vadd.f32 %v1531, %v1627
      %1629 = vmatmul.bf16.gmra.mxu0 %v1494
      %v1630 = vpop.f32.mrf.mxu0
      %v1631 = vadd.f32 %v1531, %v1630
      %v1632 = vpop.f32.mrf.mxu0
      %v1633 = vadd.f32 %v1531, %v1632
      %1634 = vmatmul.bf16.gmra.mxu0 %v1497
      %v1635 = vpop.f32.mrf.mxu0
      %v1636 = vadd.f32 %v1531, %v1635
      %v1637 = vpop.f32.mrf.mxu0
      %v1638 = vadd.f32 %v1531, %v1637
      %1639 = vmatmul.bf16.gmra.mxu0 %v1500
      %v1640 = vpop.f32.mrf.mxu0
      %v1641 = vadd.f32 %v1531, %v1640
      %v1642 = vpop.f32.mrf.mxu0
      %v1643 = vadd.f32 %v1531, %v1642
      %1644 = vmatmul.bf16.gmra.mxu0 %v1503
      %v1645 = vpop.f32.mrf.mxu0
      %v1646 = vadd.f32 %v1531, %v1645
      %v1647 = vpop.f32.mrf.mxu0
      %v1648 = vadd.f32 %v1531, %v1647
      %1649 = vmatmul.bf16.gmra.mxu0 %v1506
      %v1650 = vpop.f32.mrf.mxu0
      %v1651 = vadd.f32 %v1531, %v1650
      %v1652 = vpop.f32.mrf.mxu0
      %v1653 = vadd.f32 %v1531, %v1652
      %1654 = vmatmul.bf16.gmra.mxu0 %v1509
      %v1655 = vpop.f32.mrf.mxu0
      %v1656 = vadd.f32 %v1531, %v1655
      %v1657 = vpop.f32.mrf.mxu0
      %v1658 = vadd.f32 %v1531, %v1657
      %1659 = vdwg.mxu0
      %1660 = vmatpush.bf16.msra.mxu0 0
      %1661 = vmatpush.bf16.msra.mxu0 0
      %1662 = vmatpush.bf16.msra.mxu0 0
      %1663 = vmatpush.bf16.msra.mxu0 0
      %1664 = vmatpush.bf16.msra.mxu0 0
      %1665 = vmatpush.bf16.msra.mxu0 0
      %1666 = vmatpush.bf16.msra.mxu0 0
      %1667 = vmatpush.bf16.msra.mxu0 %v1577
      %1668 = vmatmul.bf16.gmra.mxu0 %v1588
      %v1669 = vpop.f32.mrf.mxu0
      %v1670 = vadd.f32 %v1621, %v1669
      %v1671 = vpop.f32.mrf.mxu0
      %v1672 = vadd.f32 %v1623, %v1671
      %1673 = vmatmul.bf16.gmra.mxu0 %v1591
      %v1674 = vpop.f32.mrf.mxu0
      %v1675 = vadd.f32 %v1626, %v1674
      %v1676 = vpop.f32.mrf.mxu0
      %v1677 = vadd.f32 %v1628, %v1676
      %1678 = vmatmul.bf16.gmra.mxu0 %v1594
      %v1679 = vpop.f32.mrf.mxu0
      %v1680 = vadd.f32 %v1631, %v1679
      %v1681 = vpop.f32.mrf.mxu0
      %v1682 = vadd.f32 %v1633, %v1681
      %1683 = vmatmul.bf16.gmra.mxu0 %v1597
      %v1684 = vpop.f32.mrf.mxu0
      %v1685 = vadd.f32 %v1636, %v1684
      %v1686 = vpop.f32.mrf.mxu0
      %v1687 = vadd.f32 %v1638, %v1686
      %1688 = vmatmul.bf16.gmra.mxu0 %v1600
      %v1689 = vpop.f32.mrf.mxu0
      %v1690 = vadd.f32 %v1641, %v1689
      %v1691 = vpop.f32.mrf.mxu0
      %v1692 = vadd.f32 %v1643, %v1691
      %1693 = vmatmul.bf16.gmra.mxu0 %v1603
      %v1694 = vpop.f32.mrf.mxu0
      %v1695 = vadd.f32 %v1646, %v1694
      %v1696 = vpop.f32.mrf.mxu0
      %v1697 = vadd.f32 %v1648, %v1696
      %1698 = vmatmul.bf16.gmra.mxu0 %v1606
      %v1699 = vpop.f32.mrf.mxu0
      %v1700 = vadd.f32 %v1651, %v1699
      %v1701 = vpop.f32.mrf.mxu0
      %v1702 = vadd.f32 %v1653, %v1701
      %1703 = vmatmul.bf16.gmra.mxu0 %v1609
      %v1704 = vpop.f32.mrf.mxu0
      %v1705 = vadd.f32 %v1656, %v1704
      %v1706 = vpop.f32.mrf.mxu0
      %v1707 = vadd.f32 %v1658, %v1706
      %1708 = vdwg.mxu0
      %v1709 = vmax.f32 %v1670, 0.0
      %v1710 = vmax.f32 %v1672, 0.0
      %v1711 = vmax.f32 %v1675, 0.0
      %v1712 = vmax.f32 %v1677, 0.0
      %v1713 = vmax.f32 %v1680, 0.0
      %v1714 = vmax.f32 %v1682, 0.0
      %v1715 = vmax.f32 %v1685, 0.0
      %v1716 = vmax.f32 %v1687, 0.0
      %v1717 = vmax.f32 %v1690, 0.0
      %v1718 = vmax.f32 %v1692, 0.0
      %v1719 = vmax.f32 %v1695, 0.0
      %v1720 = vmax.f32 %v1697, 0.0
      %v1721 = vmax.f32 %v1700, 0.0
      %v1722 = vmax.f32 %v1702, 0.0
      %v1723 = vmax.f32 %v1705, 0.0
      %v1724 = vmax.f32 %v1707, 0.0
      %v1725 = vpack.c.bf16 %v1709, %v1709
      %v1726 = vpack.c.bf16 %v1710, %v1710
      %v1727 = vpack.c.bf16 %v1711, %v1711
      %v1728 = vpack.c.bf16 %v1712, %v1712
      %v1729 = vpack.c.bf16 %v1713, %v1713
      %v1730 = vpack.c.bf16 %v1714, %v1714
      %v1731 = vpack.c.bf16 %v1715, %v1715
      %v1732 = vpack.c.bf16 %v1716, %v1716
      %v1733 = vpack.c.bf16 %v1717, %v1717
      %v1734 = vpack.c.bf16 %v1718, %v1718
      %v1735 = vpack.c.bf16 %v1719, %v1719
      %v1736 = vpack.c.bf16 %v1720, %v1720
      %v1737 = vpack.c.bf16 %v1721, %v1721
      %v1738 = vpack.c.bf16 %v1722, %v1722
      %v1739 = vpack.c.bf16 %v1723, %v1723
      %v1740 = vpack.c.bf16 %v1724, %v1724
      %1741 = vst [vmem:[%s194] sm:$0xf] %v1725
      %1742 = vst [vmem:[%s194 + $0x4] sm:$0xf] %v1726
      %1743 = vst [vmem:[%s194 + $0x8] sm:$0xf] %v1727
      %1744 = vst [vmem:[%s194 + $0xc] sm:$0xf] %v1728
      %1745 = vst [vmem:[%s194 + $0x10] sm:$0xf] %v1729
      %1746 = vst [vmem:[%s194 + $0x14] sm:$0xf] %v1730
      %1747 = vst [vmem:[%s194 + $0x18] sm:$0xf] %v1731
      %1748 = vst [vmem:[%s194 + $0x1c] sm:$0xf] %v1732
      %1749 = vst [vmem:[%s194 + $0x20] sm:$0xf] %v1733
      %1750 = vst [vmem:[%s194 + $0x24] sm:$0xf] %v1734
      %1751 = vst [vmem:[%s194 + $0x28] sm:$0xf] %v1735
      %1752 = vst [vmem:[%s194 + $0x2c] sm:$0xf] %v1736
      %1753 = vst [vmem:[%s194 + $0x30] sm:$0xf] %v1737
      %1754 = vst [vmem:[%s194 + $0x34] sm:$0xf] %v1738
      %1755 = vst [vmem:[%s194 + $0x38] sm:$0xf] %v1739
      %1756 = vst [vmem:[%s194 + $0x3c] sm:$0xf] %v1740
      %s1757 = smul.u32 8, %s19
      %p1758 = scmp.lt.s32.totalorder %s18, 1
      %s1759 = scalar_select %p1758, %s18, 1
      %p1760 = scmp.lt.s32.totalorder %s1757, 15
      %s1761 = scalar_select %p1760, %s1757, 15
      %s1762 = smul.addr %s1761, 2
      %s1763 = smul.addr %s1759, 32
      %s1764 = sadd.s32 %s1762, %s1763
      %s1765 = smul.addr %s1764, 4
      %s1766 = scalar_lea.vmem %s3, %s1765
      // Predicated region
      $region41: #{unet_block_forward.2} parent=31 // pred_check
        %p1767 = pneg %p114
      $region42: #{unet_block_forward.2} parent=31 // pred_check_branch
        %1769 = sbr.rel (%p1767) target = $region44
      $region43: #{unet_block_forward.2} parent=31 // pred_region
        %s1770 = smul.u32 8, %s19
      $region44: #{unet_block_forward.2} parent=31 // pred_fallthru
        _
    $region32: #{unet_block_forward.2} parent=5 // pred_fallthru
      _
    %p1771 = scmp.le.s32.totalorder 2, %s9
    // Predicated region
    $region45: #{unet_block_forward.2} parent=5 // pred_check
      %p1772 = pneg %p1771
    $region46: #{unet_block_forward.2} parent=5 // pred_check_branch
      %1774 = sbr.rel (%p1772) target = $region48
    $region47: #{unet_block_forward.2} parent=5 // pred_region
      %s1775 = ssub.s32 %s9, 2
      // Predicated region
      $region49: #{unet_block_forward.2} parent=47 // pred_check
        %p1776 = pneg %p120
      $region50: #{unet_block_forward.2} parent=47 // pred_check_branch
        %1778 = sbr.rel (%p1776) target = $region52
      $region51: #{unet_block_forward.2} parent=47 // pred_region
        %s1779 = smul.u32 8, %s21
        %p1780 = scmp.lt.s32.totalorder %s20, 1
        %s1781 = scalar_select %p1780, %s20, 1
        %p1782 = scmp.lt.s32.totalorder %s1779, 15
        %s1783 = scalar_select %p1782, %s1779, 15
        %s1784 = smul.addr %s1783, 2
        %s1785 = smul.addr %s1781, 32
        %s1786 = sadd.s32 %s1784, %s1785
        %s1787 = smul.addr %s1786, 4
        %s1788 = scalar_lea.vmem %s3, %s1787
      $region52: #{unet_block_forward.2} parent=47 // pred_fallthru
        _
    $region48: #{unet_block_forward.2} parent=5 // pred_fallthru
      _
  $region6: #{unet_block_forward.2} parent=0 // loop_footer
    %s13 = sadd.s32 1, %s9
  $region7: #{unet_block_forward.2} parent=0 // loop_footer_branch
    %8 = sbr.rel target = $region3
  $region8: #{unet_block_forward.2} parent=0 // loop_exit
    _

</llo_original>
